<compile_context>
chip_gen: v6e
topology: v6e:2x2x1
jax: 0.10.0
libtpu: 0.0.40
codegen_flags: <defaults>
</compile_context>

<pallas_src>
import jax
import jax.numpy as jnp
from jax.experimental import pallas as pl
from jax.experimental.pallas import tpu as pltpu

# ---------------- model hyper-parameters (small, consistent w/ module) ------
BATCH = 8
INPUT_DIM = 64          # embed_dim, divisible by num_heads=8
NUM_HEADS = 8           # only affects head split; with seq_len=1 it cancels
HIDDEN_DIM = 128
OUTPUT_DIM = 32
OUT_PAD = 128           # lane-dense padded output width
GROWTH = 128
DENSE_LAYERS = 4
FINAL_DENSE_OUT = INPUT_DIM + GROWTH * DENSE_LAYERS  # 576
EPS = 1e-5
WEIGHT_DTYPE = jnp.bfloat16

_HP = jax.lax.Precision.HIGHEST


def _hdot(a, b):
    return jnp.dot(a, b, precision=_HP)


# ------------------------------ kernel --------------------------------------
def minn_kernel(*refs):
    out_ref = refs[-1]
    it = iter(refs[:-1])
    nxt = lambda: next(it)
    f32 = lambda r: r[...].astype(jnp.float32)

    x = f32(nxt())

    # Fused (residual + seq_len==1 attention): a single MXU matmul.
    w_att, b_att = nxt(), nxt()
    h = jnp.dot(x, f32(w_att), preferred_element_type=jnp.float32) + b_att[...]

    # LayerNorm over the feature (lane) axis.
    lng, lnb = nxt(), nxt()
    mu = jnp.mean(h, axis=-1, keepdims=True)
    var = jnp.mean((h - mu) ** 2, axis=-1, keepdims=True)
    h = (h - mu) * jax.lax.rsqrt(var + EPS) * lng[...] + lnb[...]

    # Post-attention Linear(D, D).
    wl, bl = nxt(), nxt()
    h = jnp.dot(h, f32(wl), preferred_element_type=jnp.float32) + bl[...]

    # DenseBlock without concatenation: split-weight accumulation over the
    # lane-aligned segments [h, z0, z1, ...].
    segs = [h]
    for i in range(DENSE_LAYERS):
        w_segs = [nxt() for _ in range(i + 1)]
        b, g, beta = nxt(), nxt(), nxt()
        z = b[...]
        for s, ws in zip(segs, w_segs):
            z = z + jnp.dot(s, f32(ws), preferred_element_type=jnp.float32)
        z = jnp.maximum(z, 0.0)
        # BatchNorm1d (training mode): per-feature batch stats, biased var.
        bm = jnp.mean(z, axis=0, keepdims=True)
        bvar = jnp.mean((z - bm) ** 2, axis=0, keepdims=True)
        z = (z - bm) * jax.lax.rsqrt(bvar + EPS) * g[...] + beta[...]
        segs.append(z)

    # fc: Linear(576, 128) via split-weight accumulation -> ReLU -> Linear.
    wf1_segs = [nxt() for _ in range(DENSE_LAYERS + 1)]
    bf1 = nxt()
    y = bf1[...]
    for s, ws in zip(segs, wf1_segs):
        y = y + jnp.dot(s, f32(ws), preferred_element_type=jnp.float32)
    y = jnp.maximum(y, 0.0)

    wf2, bf2 = nxt(), nxt()
    y = jnp.dot(y, f32(wf2), preferred_element_type=jnp.float32) + bf2[...]
    out_ref[...] = y.astype(out_ref.dtype)      # lane-dense (B, 128) store


# --------------------------- parameters -------------------------------------
def make_params(key):
    """Deterministic synthetic parameters. Linear weights stored (in, out)."""
    def nxt():
        nonlocal key
        key, sub = jax.random.split(key)
        return sub

    def lin(din, dout, scale=0.05):
        w = jax.random.normal(nxt(), (din, dout), jnp.float32) * scale
        b = jax.random.normal(nxt(), (1, dout), jnp.float32) * scale
        return w, b

    p = {}
    p["wv"], p["bv"] = lin(INPUT_DIM, INPUT_DIM)       # attention v_proj
    p["wo"], p["bo"] = lin(INPUT_DIM, INPUT_DIM)       # attention out_proj
    p["lng"] = jnp.ones((1, INPUT_DIM), jnp.float32)   # LayerNorm default init
    p["lnb"] = jnp.zeros((1, INPUT_DIM), jnp.float32)
    p["wl"], p["bl"] = lin(INPUT_DIM, INPUT_DIM)       # attention-block linear
    for i in range(DENSE_LAYERS):
        din = INPUT_DIM + i * GROWTH
        w, b = lin(din, GROWTH)
        p[f"w{i}"], p[f"b{i}"] = w, b
        p[f"g{i}"] = jnp.ones((1, GROWTH), jnp.float32)    # BN weight default
        p[f"be{i}"] = jnp.zeros((1, GROWTH), jnp.float32)  # BN bias default
    p["wf1"], p["bf1"] = lin(FINAL_DENSE_OUT, HIDDEN_DIM)
    p["wf2"], p["bf2"] = lin(HIDDEN_DIM, OUTPUT_DIM)
    return p


def _fused_attention(p):
    """h = x @ (I + Wv Wo) + (bv Wo + bo)  — exact for seq_len == 1."""
    w_att = jnp.eye(INPUT_DIM, dtype=jnp.float32) + _hdot(p["wv"], p["wo"])
    b_att = _hdot(p["bv"], p["wo"]) + p["bo"]
    return w_att, b_att


def _seg_sizes(n_growth_segs):
    return [INPUT_DIM] + [GROWTH] * n_growth_segs


def _split_rows(w, sizes):
    out, off = [], 0
    for s in sizes:
        out.append(w[off:off + s])
        off += s
    return out


def prepare_kernel_args(x, p):
    wq = lambda w: w.astype(WEIGHT_DTYPE)
    w_att, b_att = _fused_attention(p)
    args = [x, wq(w_att), b_att, p["lng"], p["lnb"], wq(p["wl"]), p["bl"]]
    for i in range(DENSE_LAYERS):
        args += [wq(s) for s in _split_rows(p[f"w{i}"], _seg_sizes(i))]
        args += [p[f"b{i}"], p[f"g{i}"], p[f"be{i}"]]
    args += [wq(s) for s in _split_rows(p["wf1"], _seg_sizes(DENSE_LAYERS))]
    args += [p["bf1"]]
    wf2 = jnp.pad(p["wf2"], ((0, 0), (0, OUT_PAD - OUTPUT_DIM)))
    bf2 = jnp.pad(p["bf2"], ((0, 0), (0, OUT_PAD - OUTPUT_DIM)))
    args += [wq(wf2), bf2]
    return args


def _cost_estimate(args, batch):
    kn = [(INPUT_DIM, INPUT_DIM), (INPUT_DIM, INPUT_DIM)]
    kn += [(INPUT_DIM + i * GROWTH, GROWTH) for i in range(DENSE_LAYERS)]
    kn += [(FINAL_DENSE_OUT, HIDDEN_DIM), (HIDDEN_DIM, OUT_PAD)]
    flops = 2 * batch * sum(k * n for k, n in kn)
    bytes_accessed = sum(int(a.size) * jnp.dtype(a.dtype).itemsize for a in args)
    bytes_accessed += batch * OUT_PAD * 4
    transcendentals = batch + DENSE_LAYERS * GROWTH          # rsqrt in LN / BN
    return pl.CostEstimate(flops=flops, transcendentals=transcendentals,
                           bytes_accessed=bytes_accessed)


@jax.jit
def minn_forward(x, p):
    args = prepare_kernel_args(x, p)
    vmem = pltpu.MemorySpace.VMEM
    out = pl.pallas_call(
        minn_kernel,
        out_shape=jax.ShapeDtypeStruct((x.shape[0], OUT_PAD), jnp.float32),
        in_specs=[pl.BlockSpec(memory_space=vmem)] * len(args),
        out_specs=pl.BlockSpec(memory_space=vmem),
        cost_estimate=_cost_estimate(args, x.shape[0]),
    )(*args)
    return out[:, :OUTPUT_DIM]


# ---------------------------- references ------------------------------------
def minn_reference_f32(x, p):
    """Pure-f32 reference of the original module math."""
    v = _hdot(x, p["wv"]) + p["bv"]
    attn = _hdot(v, p["wo"]) + p["bo"]
    h = x + attn
    mu = jnp.mean(h, axis=-1, keepdims=True)
    var = jnp.mean((h - mu) ** 2, axis=-1, keepdims=True)
    h = (h - mu) / jnp.sqrt(var + EPS) * p["lng"] + p["lnb"]
    h = _hdot(h, p["wl"]) + p["bl"]
    feats = h
    for i in range(DENSE_LAYERS):
        z = jnp.maximum(_hdot(feats, p[f"w{i}"]) + p[f"b{i}"], 0.0)
        bm = jnp.mean(z, axis=0, keepdims=True)
        bvv = jnp.mean((z - bm) ** 2, axis=0, keepdims=True)
        z = (z - bm) / jnp.sqrt(bvv + EPS) * p[f"g{i}"] + p[f"be{i}"]
        feats = jnp.concatenate([feats, z], axis=-1)
    y = jnp.maximum(_hdot(feats, p["wf1"]) + p["bf1"], 0.0)
    return _hdot(y, p["wf2"]) + p["bf2"]


def minn_reference_bf16w(x, p):
    """Reference using the same bf16-quantized (and attention-fused) weights
    the kernel consumes; isolates kernel correctness from quantization."""
    q = lambda w: w.astype(WEIGHT_DTYPE).astype(jnp.float32)
    w_att, b_att = _fused_attention(p)
    h = _hdot(x, q(w_att)) + b_att
    mu = jnp.mean(h, axis=-1, keepdims=True)
    var = jnp.mean((h - mu) ** 2, axis=-1, keepdims=True)
    h = (h - mu) / jnp.sqrt(var + EPS) * p["lng"] + p["lnb"]
    h = _hdot(h, q(p["wl"])) + p["bl"]
    feats = h
    for i in range(DENSE_LAYERS):
        z = jnp.maximum(_hdot(feats, q(p[f"w{i}"])) + p[f"b{i}"], 0.0)
        bm = jnp.mean(z, axis=0, keepdims=True)
        bvv = jnp.mean((z - bm) ** 2, axis=0, keepdims=True)
        z = (z - bm) / jnp.sqrt(bvv + EPS) * p[f"g{i}"] + p[f"be{i}"]
        feats = jnp.concatenate([feats, z], axis=-1)
    y = jnp.maximum(_hdot(feats, q(p["wf1"])) + p["bf1"], 0.0)
    return _hdot(y, q(p["wf2"])) + p["bf2"]


if __name__ == "__main__":
    key = jax.random.PRNGKey(0)
    kx, kp = jax.random.split(key)
    x = jax.random.normal(kx, (BATCH, INPUT_DIM), jnp.float32)
    params = make_params(kp)

    out = jax.block_until_ready(minn_forward(x, params))
    ref_q = jax.block_until_ready(minn_reference_bf16w(x, params))
    ref_f = jax.block_until_ready(minn_reference_f32(x, params))

    assert out.shape == (BATCH, OUTPUT_DIM), out.shape
    # Tight check against a reference with identical (bf16) weight numerics.
    assert jnp.allclose(out, ref_q, atol=2e-3, rtol=2e-3), (
        float(jnp.max(jnp.abs(out - ref_q))))
    # Loose sanity check against full-f32 module math (deviation is only the
    # deliberate bf16 weight quantization).
    assert jnp.allclose(out, ref_f, atol=1e-1, rtol=1e-1), (
        float(jnp.max(jnp.abs(out - ref_f))))
    print("KERNEL_OK")
</pallas_src>

<mosaic_0001>
module attributes {stable_mosaic.version = 11 : i64} {
  func.func @minn_kernel(%arg0: memref<8x64xf32, #tpu.memory_space<vmem>>, %arg1: memref<64x64xbf16, #tpu.memory_space<vmem>>, %arg2: memref<1x64xf32, #tpu.memory_space<vmem>>, %arg3: memref<1x64xf32, #tpu.memory_space<vmem>>, %arg4: memref<1x64xf32, #tpu.memory_space<vmem>>, %arg5: memref<64x64xbf16, #tpu.memory_space<vmem>>, %arg6: memref<1x64xf32, #tpu.memory_space<vmem>>, %arg7: memref<64x128xbf16, #tpu.memory_space<vmem>>, %arg8: memref<1x128xf32, #tpu.memory_space<vmem>>, %arg9: memref<1x128xf32, #tpu.memory_space<vmem>>, %arg10: memref<1x128xf32, #tpu.memory_space<vmem>>, %arg11: memref<64x128xbf16, #tpu.memory_space<vmem>>, %arg12: memref<128x128xbf16, #tpu.memory_space<vmem>>, %arg13: memref<1x128xf32, #tpu.memory_space<vmem>>, %arg14: memref<1x128xf32, #tpu.memory_space<vmem>>, %arg15: memref<1x128xf32, #tpu.memory_space<vmem>>, %arg16: memref<64x128xbf16, #tpu.memory_space<vmem>>, %arg17: memref<128x128xbf16, #tpu.memory_space<vmem>>, %arg18: memref<128x128xbf16, #tpu.memory_space<vmem>>, %arg19: memref<1x128xf32, #tpu.memory_space<vmem>>, %arg20: memref<1x128xf32, #tpu.memory_space<vmem>>, %arg21: memref<1x128xf32, #tpu.memory_space<vmem>>, %arg22: memref<64x128xbf16, #tpu.memory_space<vmem>>, %arg23: memref<128x128xbf16, #tpu.memory_space<vmem>>, %arg24: memref<128x128xbf16, #tpu.memory_space<vmem>>, %arg25: memref<128x128xbf16, #tpu.memory_space<vmem>>, %arg26: memref<1x128xf32, #tpu.memory_space<vmem>>, %arg27: memref<1x128xf32, #tpu.memory_space<vmem>>, %arg28: memref<1x128xf32, #tpu.memory_space<vmem>>, %arg29: memref<64x128xbf16, #tpu.memory_space<vmem>>, %arg30: memref<128x128xbf16, #tpu.memory_space<vmem>>, %arg31: memref<128x128xbf16, #tpu.memory_space<vmem>>, %arg32: memref<128x128xbf16, #tpu.memory_space<vmem>>, %arg33: memref<128x128xbf16, #tpu.memory_space<vmem>>, %arg34: memref<1x128xf32, #tpu.memory_space<vmem>>, %arg35: memref<128x128xbf16, #tpu.memory_space<vmem>>, %arg36: memref<1x128xf32, #tpu.memory_space<vmem>>, %arg37: memref<8x128xf32, #tpu.memory_space<vmem>>) attributes {dimension_semantics = [], scalar_prefetch = 0 : i64, scratch_operands = 0 : i64, tpu.core_type = #tpu.core_type<tc>} {
    %c0 = arith.constant 0 : index
    %c0_0 = arith.constant 0 : index
    %0 = vector.load %arg0[%c0, %c0_0] : memref<8x64xf32, #tpu.memory_space<vmem>>, vector<8x64xf32>
    %c0_1 = arith.constant 0 : index
    %c0_2 = arith.constant 0 : index
    %1 = vector.load %arg1[%c0_1, %c0_2] : memref<64x64xbf16, #tpu.memory_space<vmem>>, vector<64x64xbf16>
    %2 = arith.extf %1 : vector<64x64xbf16> to vector<64x64xf32>
    %cst = arith.constant dense<0.000000e+00> : vector<8x64xf32>
    %3 = tpu.matmul %0, %2, %cst {dimension_numbers = #tpu.dot_dimension_numbers<[1], [0], [0], [1], [0, 0, 1, 1], [], []>} : vector<8x64xf32>, vector<64x64xf32>, vector<8x64xf32> -> vector<8x64xf32>
    %c0_3 = arith.constant 0 : index
    %c0_4 = arith.constant 0 : index
    %4 = vector.load %arg2[%c0_3, %c0_4] : memref<1x64xf32, #tpu.memory_space<vmem>>, vector<1x64xf32>
    %5 = vector.broadcast %4 : vector<1x64xf32> to vector<8x64xf32>
    %6 = arith.addf %3, %5 : vector<8x64xf32>
    %cst_5 = arith.constant dense<0.000000e+00> : vector<8xf32>
    %7 = vector.multi_reduction <add>, %6, %cst_5 [1] : vector<8x64xf32> to vector<8xf32>
    %8 = vector.shape_cast %7 : vector<8xf32> to vector<8x1xf32>
    %cst_6 = arith.constant 6.400000e+01 : f32
    %9 = vector.broadcast %cst_6 : f32 to vector<8x1xf32>
    %10 = arith.divf %8, %9 : vector<8x1xf32>
    %11 = vector.broadcast %10 : vector<8x1xf32> to vector<8x64xf32>
    %12 = arith.subf %6, %11 : vector<8x64xf32>
    %13 = arith.mulf %12, %12 : vector<8x64xf32>
    %cst_7 = arith.constant dense<0.000000e+00> : vector<8xf32>
    %14 = vector.multi_reduction <add>, %13, %cst_7 [1] : vector<8x64xf32> to vector<8xf32>
    %15 = vector.shape_cast %14 : vector<8xf32> to vector<8x1xf32>
    %cst_8 = arith.constant 6.400000e+01 : f32
    %16 = vector.broadcast %cst_8 : f32 to vector<8x1xf32>
    %17 = arith.divf %15, %16 : vector<8x1xf32>
    %18 = vector.broadcast %10 : vector<8x1xf32> to vector<8x64xf32>
    %19 = arith.subf %6, %18 : vector<8x64xf32>
    %cst_9 = arith.constant 9.99999974E-6 : f32
    %20 = vector.broadcast %cst_9 : f32 to vector<8x1xf32>
    %21 = arith.addf %17, %20 : vector<8x1xf32>
    %22 = math.rsqrt %21 : vector<8x1xf32>
    %23 = vector.broadcast %22 : vector<8x1xf32> to vector<8x64xf32>
    %24 = arith.mulf %19, %23 : vector<8x64xf32>
    %c0_10 = arith.constant 0 : index
    %c0_11 = arith.constant 0 : index
    %25 = vector.load %arg3[%c0_10, %c0_11] : memref<1x64xf32, #tpu.memory_space<vmem>>, vector<1x64xf32>
    %26 = vector.broadcast %25 : vector<1x64xf32> to vector<8x64xf32>
    %27 = arith.mulf %24, %26 : vector<8x64xf32>
    %c0_12 = arith.constant 0 : index
    %c0_13 = arith.constant 0 : index
    %28 = vector.load %arg4[%c0_12, %c0_13] : memref<1x64xf32, #tpu.memory_space<vmem>>, vector<1x64xf32>
    %29 = vector.broadcast %28 : vector<1x64xf32> to vector<8x64xf32>
    %30 = arith.addf %27, %29 : vector<8x64xf32>
    %c0_14 = arith.constant 0 : index
    %c0_15 = arith.constant 0 : index
    %31 = vector.load %arg5[%c0_14, %c0_15] : memref<64x64xbf16, #tpu.memory_space<vmem>>, vector<64x64xbf16>
    %32 = arith.extf %31 : vector<64x64xbf16> to vector<64x64xf32>
    %cst_16 = arith.constant dense<0.000000e+00> : vector<8x64xf32>
    %33 = tpu.matmul %30, %32, %cst_16 {dimension_numbers = #tpu.dot_dimension_numbers<[1], [0], [0], [1], [0, 0, 1, 1], [], []>} : vector<8x64xf32>, vector<64x64xf32>, vector<8x64xf32> -> vector<8x64xf32>
    %c0_17 = arith.constant 0 : index
    %c0_18 = arith.constant 0 : index
    %34 = vector.load %arg6[%c0_17, %c0_18] : memref<1x64xf32, #tpu.memory_space<vmem>>, vector<1x64xf32>
    %35 = vector.broadcast %34 : vector<1x64xf32> to vector<8x64xf32>
    %36 = arith.addf %33, %35 : vector<8x64xf32>
    %c0_19 = arith.constant 0 : index
    %c0_20 = arith.constant 0 : index
    %37 = vector.load %arg8[%c0_19, %c0_20] : memref<1x128xf32, #tpu.memory_space<vmem>>, vector<1x128xf32>
    %c0_21 = arith.constant 0 : index
    %c0_22 = arith.constant 0 : index
    %38 = vector.load %arg7[%c0_21, %c0_22] : memref<64x128xbf16, #tpu.memory_space<vmem>>, vector<64x128xbf16>
    %39 = arith.extf %38 : vector<64x128xbf16> to vector<64x128xf32>
    %cst_23 = arith.constant dense<0.000000e+00> : vector<8x128xf32>
    %40 = tpu.matmul %36, %39, %cst_23 {dimension_numbers = #tpu.dot_dimension_numbers<[1], [0], [0], [1], [0, 0, 1, 1], [], []>} : vector<8x64xf32>, vector<64x128xf32>, vector<8x128xf32> -> vector<8x128xf32>
    %41 = vector.broadcast %37 : vector<1x128xf32> to vector<8x128xf32>
    %42 = arith.addf %41, %40 : vector<8x128xf32>
    %cst_24 = arith.constant 0.000000e+00 : f32
    %43 = vector.broadcast %cst_24 : f32 to vector<8x128xf32>
    %44 = arith.maximumf %42, %43 : vector<8x128xf32>
    %cst_25 = arith.constant dense<0.000000e+00> : vector<128xf32>
    %45 = vector.multi_reduction <add>, %44, %cst_25 [0] : vector<8x128xf32> to vector<128xf32>
    %46 = vector.shape_cast %45 : vector<128xf32> to vector<1x128xf32>
    %cst_26 = arith.constant 8.000000e+00 : f32
    %47 = vector.broadcast %cst_26 : f32 to vector<1x128xf32>
    %48 = arith.divf %46, %47 : vector<1x128xf32>
    %49 = vector.broadcast %48 : vector<1x128xf32> to vector<8x128xf32>
    %50 = arith.subf %44, %49 : vector<8x128xf32>
    %51 = arith.mulf %50, %50 : vector<8x128xf32>
    %cst_27 = arith.constant dense<0.000000e+00> : vector<128xf32>
    %52 = vector.multi_reduction <add>, %51, %cst_27 [0] : vector<8x128xf32> to vector<128xf32>
    %53 = vector.shape_cast %52 : vector<128xf32> to vector<1x128xf32>
    %cst_28 = arith.constant 8.000000e+00 : f32
    %54 = vector.broadcast %cst_28 : f32 to vector<1x128xf32>
    %55 = arith.divf %53, %54 : vector<1x128xf32>
    %56 = vector.broadcast %48 : vector<1x128xf32> to vector<8x128xf32>
    %57 = arith.subf %44, %56 : vector<8x128xf32>
    %cst_29 = arith.constant 9.99999974E-6 : f32
    %58 = vector.broadcast %cst_29 : f32 to vector<1x128xf32>
    %59 = arith.addf %55, %58 : vector<1x128xf32>
    %60 = math.rsqrt %59 : vector<1x128xf32>
    %61 = vector.broadcast %60 : vector<1x128xf32> to vector<8x128xf32>
    %62 = arith.mulf %57, %61 : vector<8x128xf32>
    %c0_30 = arith.constant 0 : index
    %c0_31 = arith.constant 0 : index
    %63 = vector.load %arg9[%c0_30, %c0_31] : memref<1x128xf32, #tpu.memory_space<vmem>>, vector<1x128xf32>
    %64 = vector.broadcast %63 : vector<1x128xf32> to vector<8x128xf32>
    %65 = arith.mulf %62, %64 : vector<8x128xf32>
    %c0_32 = arith.constant 0 : index
    %c0_33 = arith.constant 0 : index
    %66 = vector.load %arg10[%c0_32, %c0_33] : memref<1x128xf32, #tpu.memory_space<vmem>>, vector<1x128xf32>
    %67 = vector.broadcast %66 : vector<1x128xf32> to vector<8x128xf32>
    %68 = arith.addf %65, %67 : vector<8x128xf32>
    %c0_34 = arith.constant 0 : index
    %c0_35 = arith.constant 0 : index
    %69 = vector.load %arg13[%c0_34, %c0_35] : memref<1x128xf32, #tpu.memory_space<vmem>>, vector<1x128xf32>
    %c0_36 = arith.constant 0 : index
    %c0_37 = arith.constant 0 : index
    %70 = vector.load %arg11[%c0_36, %c0_37] : memref<64x128xbf16, #tpu.memory_space<vmem>>, vector<64x128xbf16>
    %71 = arith.extf %70 : vector<64x128xbf16> to vector<64x128xf32>
    %cst_38 = arith.constant dense<0.000000e+00> : vector<8x128xf32>
    %72 = tpu.matmul %36, %71, %cst_38 {dimension_numbers = #tpu.dot_dimension_numbers<[1], [0], [0], [1], [0, 0, 1, 1], [], []>} : vector<8x64xf32>, vector<64x128xf32>, vector<8x128xf32> -> vector<8x128xf32>
    %73 = vector.broadcast %69 : vector<1x128xf32> to vector<8x128xf32>
    %74 = arith.addf %73, %72 : vector<8x128xf32>
    %c0_39 = arith.constant 0 : index
    %c0_40 = arith.constant 0 : index
    %75 = vector.load %arg12[%c0_39, %c0_40] : memref<128x128xbf16, #tpu.memory_space<vmem>>, vector<128x128xbf16>
    %76 = arith.extf %75 : vector<128x128xbf16> to vector<128x128xf32>
    %cst_41 = arith.constant dense<0.000000e+00> : vector<8x128xf32>
    %77 = tpu.matmul %68, %76, %cst_41 {dimension_numbers = #tpu.dot_dimension_numbers<[1], [0], [0], [1], [0, 0, 1, 1], [], []>} : vector<8x128xf32>, vector<128x128xf32>, vector<8x128xf32> -> vector<8x128xf32>
    %78 = arith.addf %74, %77 : vector<8x128xf32>
    %cst_42 = arith.constant 0.000000e+00 : f32
    %79 = vector.broadcast %cst_42 : f32 to vector<8x128xf32>
    %80 = arith.maximumf %78, %79 : vector<8x128xf32>
    %cst_43 = arith.constant dense<0.000000e+00> : vector<128xf32>
    %81 = vector.multi_reduction <add>, %80, %cst_43 [0] : vector<8x128xf32> to vector<128xf32>
    %82 = vector.shape_cast %81 : vector<128xf32> to vector<1x128xf32>
    %cst_44 = arith.constant 8.000000e+00 : f32
    %83 = vector.broadcast %cst_44 : f32 to vector<1x128xf32>
    %84 = arith.divf %82, %83 : vector<1x128xf32>
    %85 = vector.broadcast %84 : vector<1x128xf32> to vector<8x128xf32>
    %86 = arith.subf %80, %85 : vector<8x128xf32>
    %87 = arith.mulf %86, %86 : vector<8x128xf32>
    %cst_45 = arith.constant dense<0.000000e+00> : vector<128xf32>
    %88 = vector.multi_reduction <add>, %87, %cst_45 [0] : vector<8x128xf32> to vector<128xf32>
    %89 = vector.shape_cast %88 : vector<128xf32> to vector<1x128xf32>
    %cst_46 = arith.constant 8.000000e+00 : f32
    %90 = vector.broadcast %cst_46 : f32 to vector<1x128xf32>
    %91 = arith.divf %89, %90 : vector<1x128xf32>
    %92 = vector.broadcast %84 : vector<1x128xf32> to vector<8x128xf32>
    %93 = arith.subf %80, %92 : vector<8x128xf32>
    %cst_47 = arith.constant 9.99999974E-6 : f32
    %94 = vector.broadcast %cst_47 : f32 to vector<1x128xf32>
    %95 = arith.addf %91, %94 : vector<1x128xf32>
    %96 = math.rsqrt %95 : vector<1x128xf32>
    %97 = vector.broadcast %96 : vector<1x128xf32> to vector<8x128xf32>
    %98 = arith.mulf %93, %97 : vector<8x128xf32>
    %c0_48 = arith.constant 0 : index
    %c0_49 = arith.constant 0 : index
    %99 = vector.load %arg14[%c0_48, %c0_49] : memref<1x128xf32, #tpu.memory_space<vmem>>, vector<1x128xf32>
    %100 = vector.broadcast %99 : vector<1x128xf32> to vector<8x128xf32>
    %101 = arith.mulf %98, %100 : vector<8x128xf32>
    %c0_50 = arith.constant 0 : index
    %c0_51 = arith.constant 0 : index
    %102 = vector.load %arg15[%c0_50, %c0_51] : memref<1x128xf32, #tpu.memory_space<vmem>>, vector<1x128xf32>
    %103 = vector.broadcast %102 : vector<1x128xf32> to vector<8x128xf32>
    %104 = arith.addf %101, %103 : vector<8x128xf32>
    %c0_52 = arith.constant 0 : index
    %c0_53 = arith.constant 0 : index
    %105 = vector.load %arg19[%c0_52, %c0_53] : memref<1x128xf32, #tpu.memory_space<vmem>>, vector<1x128xf32>
    %c0_54 = arith.constant 0 : index
    %c0_55 = arith.constant 0 : index
    %106 = vector.load %arg16[%c0_54, %c0_55] : memref<64x128xbf16, #tpu.memory_space<vmem>>, vector<64x128xbf16>
    %107 = arith.extf %106 : vector<64x128xbf16> to vector<64x128xf32>
    %cst_56 = arith.constant dense<0.000000e+00> : vector<8x128xf32>
    %108 = tpu.matmul %36, %107, %cst_56 {dimension_numbers = #tpu.dot_dimension_numbers<[1], [0], [0], [1], [0, 0, 1, 1], [], []>} : vector<8x64xf32>, vector<64x128xf32>, vector<8x128xf32> -> vector<8x128xf32>
    %109 = vector.broadcast %105 : vector<1x128xf32> to vector<8x128xf32>
    %110 = arith.addf %109, %108 : vector<8x128xf32>
    %c0_57 = arith.constant 0 : index
    %c0_58 = arith.constant 0 : index
    %111 = vector.load %arg17[%c0_57, %c0_58] : memref<128x128xbf16, #tpu.memory_space<vmem>>, vector<128x128xbf16>
    %112 = arith.extf %111 : vector<128x128xbf16> to vector<128x128xf32>
    %cst_59 = arith.constant dense<0.000000e+00> : vector<8x128xf32>
    %113 = tpu.matmul %68, %112, %cst_59 {dimension_numbers = #tpu.dot_dimension_numbers<[1], [0], [0], [1], [0, 0, 1, 1], [], []>} : vector<8x128xf32>, vector<128x128xf32>, vector<8x128xf32> -> vector<8x128xf32>
    %114 = arith.addf %110, %113 : vector<8x128xf32>
    %c0_60 = arith.constant 0 : index
    %c0_61 = arith.constant 0 : index
    %115 = vector.load %arg18[%c0_60, %c0_61] : memref<128x128xbf16, #tpu.memory_space<vmem>>, vector<128x128xbf16>
    %116 = arith.extf %115 : vector<128x128xbf16> to vector<128x128xf32>
    %cst_62 = arith.constant dense<0.000000e+00> : vector<8x128xf32>
    %117 = tpu.matmul %104, %116, %cst_62 {dimension_numbers = #tpu.dot_dimension_numbers<[1], [0], [0], [1], [0, 0, 1, 1], [], []>} : vector<8x128xf32>, vector<128x128xf32>, vector<8x128xf32> -> vector<8x128xf32>
    %118 = arith.addf %114, %117 : vector<8x128xf32>
    %cst_63 = arith.constant 0.000000e+00 : f32
    %119 = vector.broadcast %cst_63 : f32 to vector<8x128xf32>
    %120 = arith.maximumf %118, %119 : vector<8x128xf32>
    %cst_64 = arith.constant dense<0.000000e+00> : vector<128xf32>
    %121 = vector.multi_reduction <add>, %120, %cst_64 [0] : vector<8x128xf32> to vector<128xf32>
    %122 = vector.shape_cast %121 : vector<128xf32> to vector<1x128xf32>
    %cst_65 = arith.constant 8.000000e+00 : f32
    %123 = vector.broadcast %cst_65 : f32 to vector<1x128xf32>
    %124 = arith.divf %122, %123 : vector<1x128xf32>
    %125 = vector.broadcast %124 : vector<1x128xf32> to vector<8x128xf32>
    %126 = arith.subf %120, %125 : vector<8x128xf32>
    %127 = arith.mulf %126, %126 : vector<8x128xf32>
    %cst_66 = arith.constant dense<0.000000e+00> : vector<128xf32>
    %128 = vector.multi_reduction <add>, %127, %cst_66 [0] : vector<8x128xf32> to vector<128xf32>
    %129 = vector.shape_cast %128 : vector<128xf32> to vector<1x128xf32>
    %cst_67 = arith.constant 8.000000e+00 : f32
    %130 = vector.broadcast %cst_67 : f32 to vector<1x128xf32>
    %131 = arith.divf %129, %130 : vector<1x128xf32>
    %132 = vector.broadcast %124 : vector<1x128xf32> to vector<8x128xf32>
    %133 = arith.subf %120, %132 : vector<8x128xf32>
    %cst_68 = arith.constant 9.99999974E-6 : f32
    %134 = vector.broadcast %cst_68 : f32 to vector<1x128xf32>
    %135 = arith.addf %131, %134 : vector<1x128xf32>
    %136 = math.rsqrt %135 : vector<1x128xf32>
    %137 = vector.broadcast %136 : vector<1x128xf32> to vector<8x128xf32>
    %138 = arith.mulf %133, %137 : vector<8x128xf32>
    %c0_69 = arith.constant 0 : index
    %c0_70 = arith.constant 0 : index
    %139 = vector.load %arg20[%c0_69, %c0_70] : memref<1x128xf32, #tpu.memory_space<vmem>>, vector<1x128xf32>
    %140 = vector.broadcast %139 : vector<1x128xf32> to vector<8x128xf32>
    %141 = arith.mulf %138, %140 : vector<8x128xf32>
    %c0_71 = arith.constant 0 : index
    %c0_72 = arith.constant 0 : index
    %142 = vector.load %arg21[%c0_71, %c0_72] : memref<1x128xf32, #tpu.memory_space<vmem>>, vector<1x128xf32>
    %143 = vector.broadcast %142 : vector<1x128xf32> to vector<8x128xf32>
    %144 = arith.addf %141, %143 : vector<8x128xf32>
    %c0_73 = arith.constant 0 : index
    %c0_74 = arith.constant 0 : index
    %145 = vector.load %arg26[%c0_73, %c0_74] : memref<1x128xf32, #tpu.memory_space<vmem>>, vector<1x128xf32>
    %c0_75 = arith.constant 0 : index
    %c0_76 = arith.constant 0 : index
    %146 = vector.load %arg22[%c0_75, %c0_76] : memref<64x128xbf16, #tpu.memory_space<vmem>>, vector<64x128xbf16>
    %147 = arith.extf %146 : vector<64x128xbf16> to vector<64x128xf32>
    %cst_77 = arith.constant dense<0.000000e+00> : vector<8x128xf32>
    %148 = tpu.matmul %36, %147, %cst_77 {dimension_numbers = #tpu.dot_dimension_numbers<[1], [0], [0], [1], [0, 0, 1, 1], [], []>} : vector<8x64xf32>, vector<64x128xf32>, vector<8x128xf32> -> vector<8x128xf32>
    %149 = vector.broadcast %145 : vector<1x128xf32> to vector<8x128xf32>
    %150 = arith.addf %149, %148 : vector<8x128xf32>
    %c0_78 = arith.constant 0 : index
    %c0_79 = arith.constant 0 : index
    %151 = vector.load %arg23[%c0_78, %c0_79] : memref<128x128xbf16, #tpu.memory_space<vmem>>, vector<128x128xbf16>
    %152 = arith.extf %151 : vector<128x128xbf16> to vector<128x128xf32>
    %cst_80 = arith.constant dense<0.000000e+00> : vector<8x128xf32>
    %153 = tpu.matmul %68, %152, %cst_80 {dimension_numbers = #tpu.dot_dimension_numbers<[1], [0], [0], [1], [0, 0, 1, 1], [], []>} : vector<8x128xf32>, vector<128x128xf32>, vector<8x128xf32> -> vector<8x128xf32>
    %154 = arith.addf %150, %153 : vector<8x128xf32>
    %c0_81 = arith.constant 0 : index
    %c0_82 = arith.constant 0 : index
    %155 = vector.load %arg24[%c0_81, %c0_82] : memref<128x128xbf16, #tpu.memory_space<vmem>>, vector<128x128xbf16>
    %156 = arith.extf %155 : vector<128x128xbf16> to vector<128x128xf32>
    %cst_83 = arith.constant dense<0.000000e+00> : vector<8x128xf32>
    %157 = tpu.matmul %104, %156, %cst_83 {dimension_numbers = #tpu.dot_dimension_numbers<[1], [0], [0], [1], [0, 0, 1, 1], [], []>} : vector<8x128xf32>, vector<128x128xf32>, vector<8x128xf32> -> vector<8x128xf32>
    %158 = arith.addf %154, %157 : vector<8x128xf32>
    %c0_84 = arith.constant 0 : index
    %c0_85 = arith.constant 0 : index
    %159 = vector.load %arg25[%c0_84, %c0_85] : memref<128x128xbf16, #tpu.memory_space<vmem>>, vector<128x128xbf16>
    %160 = arith.extf %159 : vector<128x128xbf16> to vector<128x128xf32>
    %cst_86 = arith.constant dense<0.000000e+00> : vector<8x128xf32>
    %161 = tpu.matmul %144, %160, %cst_86 {dimension_numbers = #tpu.dot_dimension_numbers<[1], [0], [0], [1], [0, 0, 1, 1], [], []>} : vector<8x128xf32>, vector<128x128xf32>, vector<8x128xf32> -> vector<8x128xf32>
    %162 = arith.addf %158, %161 : vector<8x128xf32>
    %cst_87 = arith.constant 0.000000e+00 : f32
    %163 = vector.broadcast %cst_87 : f32 to vector<8x128xf32>
    %164 = arith.maximumf %162, %163 : vector<8x128xf32>
    %cst_88 = arith.constant dense<0.000000e+00> : vector<128xf32>
    %165 = vector.multi_reduction <add>, %164, %cst_88 [0] : vector<8x128xf32> to vector<128xf32>
    %166 = vector.shape_cast %165 : vector<128xf32> to vector<1x128xf32>
    %cst_89 = arith.constant 8.000000e+00 : f32
    %167 = vector.broadcast %cst_89 : f32 to vector<1x128xf32>
    %168 = arith.divf %166, %167 : vector<1x128xf32>
    %169 = vector.broadcast %168 : vector<1x128xf32> to vector<8x128xf32>
    %170 = arith.subf %164, %169 : vector<8x128xf32>
    %171 = arith.mulf %170, %170 : vector<8x128xf32>
    %cst_90 = arith.constant dense<0.000000e+00> : vector<128xf32>
    %172 = vector.multi_reduction <add>, %171, %cst_90 [0] : vector<8x128xf32> to vector<128xf32>
    %173 = vector.shape_cast %172 : vector<128xf32> to vector<1x128xf32>
    %cst_91 = arith.constant 8.000000e+00 : f32
    %174 = vector.broadcast %cst_91 : f32 to vector<1x128xf32>
    %175 = arith.divf %173, %174 : vector<1x128xf32>
    %176 = vector.broadcast %168 : vector<1x128xf32> to vector<8x128xf32>
    %177 = arith.subf %164, %176 : vector<8x128xf32>
    %cst_92 = arith.constant 9.99999974E-6 : f32
    %178 = vector.broadcast %cst_92 : f32 to vector<1x128xf32>
    %179 = arith.addf %175, %178 : vector<1x128xf32>
    %180 = math.rsqrt %179 : vector<1x128xf32>
    %181 = vector.broadcast %180 : vector<1x128xf32> to vector<8x128xf32>
    %182 = arith.mulf %177, %181 : vector<8x128xf32>
    %c0_93 = arith.constant 0 : index
    %c0_94 = arith.constant 0 : index
    %183 = vector.load %arg27[%c0_93, %c0_94] : memref<1x128xf32, #tpu.memory_space<vmem>>, vector<1x128xf32>
    %184 = vector.broadcast %183 : vector<1x128xf32> to vector<8x128xf32>
    %185 = arith.mulf %182, %184 : vector<8x128xf32>
    %c0_95 = arith.constant 0 : index
    %c0_96 = arith.constant 0 : index
    %186 = vector.load %arg28[%c0_95, %c0_96] : memref<1x128xf32, #tpu.memory_space<vmem>>, vector<1x128xf32>
    %187 = vector.broadcast %186 : vector<1x128xf32> to vector<8x128xf32>
    %188 = arith.addf %185, %187 : vector<8x128xf32>
    %c0_97 = arith.constant 0 : index
    %c0_98 = arith.constant 0 : index
    %189 = vector.load %arg34[%c0_97, %c0_98] : memref<1x128xf32, #tpu.memory_space<vmem>>, vector<1x128xf32>
    %c0_99 = arith.constant 0 : index
    %c0_100 = arith.constant 0 : index
    %190 = vector.load %arg29[%c0_99, %c0_100] : memref<64x128xbf16, #tpu.memory_space<vmem>>, vector<64x128xbf16>
    %191 = arith.extf %190 : vector<64x128xbf16> to vector<64x128xf32>
    %cst_101 = arith.constant dense<0.000000e+00> : vector<8x128xf32>
    %192 = tpu.matmul %36, %191, %cst_101 {dimension_numbers = #tpu.dot_dimension_numbers<[1], [0], [0], [1], [0, 0, 1, 1], [], []>} : vector<8x64xf32>, vector<64x128xf32>, vector<8x128xf32> -> vector<8x128xf32>
    %193 = vector.broadcast %189 : vector<1x128xf32> to vector<8x128xf32>
    %194 = arith.addf %193, %192 : vector<8x128xf32>
    %c0_102 = arith.constant 0 : index
    %c0_103 = arith.constant 0 : index
    %195 = vector.load %arg30[%c0_102, %c0_103] : memref<128x128xbf16, #tpu.memory_space<vmem>>, vector<128x128xbf16>
    %196 = arith.extf %195 : vector<128x128xbf16> to vector<128x128xf32>
    %cst_104 = arith.constant dense<0.000000e+00> : vector<8x128xf32>
    %197 = tpu.matmul %68, %196, %cst_104 {dimension_numbers = #tpu.dot_dimension_numbers<[1], [0], [0], [1], [0, 0, 1, 1], [], []>} : vector<8x128xf32>, vector<128x128xf32>, vector<8x128xf32> -> vector<8x128xf32>
    %198 = arith.addf %194, %197 : vector<8x128xf32>
    %c0_105 = arith.constant 0 : index
    %c0_106 = arith.constant 0 : index
    %199 = vector.load %arg31[%c0_105, %c0_106] : memref<128x128xbf16, #tpu.memory_space<vmem>>, vector<128x128xbf16>
    %200 = arith.extf %199 : vector<128x128xbf16> to vector<128x128xf32>
    %cst_107 = arith.constant dense<0.000000e+00> : vector<8x128xf32>
    %201 = tpu.matmul %104, %200, %cst_107 {dimension_numbers = #tpu.dot_dimension_numbers<[1], [0], [0], [1], [0, 0, 1, 1], [], []>} : vector<8x128xf32>, vector<128x128xf32>, vector<8x128xf32> -> vector<8x128xf32>
    %202 = arith.addf %198, %201 : vector<8x128xf32>
    %c0_108 = arith.constant 0 : index
    %c0_109 = arith.constant 0 : index
    %203 = vector.load %arg32[%c0_108, %c0_109] : memref<128x128xbf16, #tpu.memory_space<vmem>>, vector<128x128xbf16>
    %204 = arith.extf %203 : vector<128x128xbf16> to vector<128x128xf32>
    %cst_110 = arith.constant dense<0.000000e+00> : vector<8x128xf32>
    %205 = tpu.matmul %144, %204, %cst_110 {dimension_numbers = #tpu.dot_dimension_numbers<[1], [0], [0], [1], [0, 0, 1, 1], [], []>} : vector<8x128xf32>, vector<128x128xf32>, vector<8x128xf32> -> vector<8x128xf32>
    %206 = arith.addf %202, %205 : vector<8x128xf32>
    %c0_111 = arith.constant 0 : index
    %c0_112 = arith.constant 0 : index
    %207 = vector.load %arg33[%c0_111, %c0_112] : memref<128x128xbf16, #tpu.memory_space<vmem>>, vector<128x128xbf16>
    %208 = arith.extf %207 : vector<128x128xbf16> to vector<128x128xf32>
    %cst_113 = arith.constant dense<0.000000e+00> : vector<8x128xf32>
    %209 = tpu.matmul %188, %208, %cst_113 {dimension_numbers = #tpu.dot_dimension_numbers<[1], [0], [0], [1], [0, 0, 1, 1], [], []>} : vector<8x128xf32>, vector<128x128xf32>, vector<8x128xf32> -> vector<8x128xf32>
    %210 = arith.addf %206, %209 : vector<8x128xf32>
    %cst_114 = arith.constant 0.000000e+00 : f32
    %211 = vector.broadcast %cst_114 : f32 to vector<8x128xf32>
    %212 = arith.maximumf %210, %211 : vector<8x128xf32>
    %c0_115 = arith.constant 0 : index
    %c0_116 = arith.constant 0 : index
    %213 = vector.load %arg35[%c0_115, %c0_116] : memref<128x128xbf16, #tpu.memory_space<vmem>>, vector<128x128xbf16>
    %214 = arith.extf %213 : vector<128x128xbf16> to vector<128x128xf32>
    %cst_117 = arith.constant dense<0.000000e+00> : vector<8x128xf32>
    %215 = tpu.matmul %212, %214, %cst_117 {dimension_numbers = #tpu.dot_dimension_numbers<[1], [0], [0], [1], [0, 0, 1, 1], [], []>} : vector<8x128xf32>, vector<128x128xf32>, vector<8x128xf32> -> vector<8x128xf32>
    %c0_118 = arith.constant 0 : index
    %c0_119 = arith.constant 0 : index
    %216 = vector.load %arg36[%c0_118, %c0_119] : memref<1x128xf32, #tpu.memory_space<vmem>>, vector<1x128xf32>
    %217 = vector.broadcast %216 : vector<1x128xf32> to vector<8x128xf32>
    %218 = arith.addf %215, %217 : vector<8x128xf32>
    %c0_120 = arith.constant 0 : index
    %c0_121 = arith.constant 0 : index
    %219 = vector.load %arg37[%c0_120, %c0_121] : memref<8x128xf32, #tpu.memory_space<vmem>>, vector<8x128xf32>
    tpu.vector_store %arg37[%c0_120, %c0_121], %218 {strides = array<i32>} : memref<8x128xf32, #tpu.memory_space<vmem>>, vector<8x128xf32>,
    return
  }
}

</mosaic_0001>

<llo_original>
// kernel: minn_forward.1
$region0: #{minn_forward.1}
  #allocation0 [shape = 'u32[]', space=smem, size = 0x4, offset = 0x4, fixed_abs, tag = 'smem constant byte address 0x4 - core index']
  #allocation1 [shape = 'u32[144,128]{1,0:T(1,128)}', space=vmem, size = 0x12000, scoped, tag = 'internal scratch']
  %s0 = inlined_call_operand.smem [shape: u32[38], index: -1, kind: input, shape index: {}]
  %s1 = sld [smem:[%s0]]
  %s2 = scalar_lea.smem %s0, 1
  %s3 = sld [smem:[%s2]]
  %s4 = scalar_lea.smem %s0, 2
  %s5 = sld [smem:[%s4]]
  %s6 = scalar_lea.smem %s0, 3
  %s7 = sld [smem:[%s6]]
  %s8 = scalar_lea.smem %s0, 4
  %s9 = sld [smem:[%s8]]
  %s10 = scalar_lea.smem %s0, 5
  %s11 = sld [smem:[%s10]]
  %s12 = scalar_lea.smem %s0, 6
  %s13 = sld [smem:[%s12]]
  %s14 = scalar_lea.smem %s0, 7
  %s15 = sld [smem:[%s14]]
  %s16 = scalar_lea.smem %s0, 8
  %s17 = sld [smem:[%s16]]
  %s18 = scalar_lea.smem %s0, 9
  %s19 = sld [smem:[%s18]]
  %s20 = scalar_lea.smem %s0, 10
  %s21 = sld [smem:[%s20]]
  %s22 = scalar_lea.smem %s0, 11
  %s23 = sld [smem:[%s22]]
  %s24 = scalar_lea.smem %s0, 12
  %s25 = sld [smem:[%s24]]
  %s26 = scalar_lea.smem %s0, 13
  %s27 = sld [smem:[%s26]]
  %s28 = scalar_lea.smem %s0, 14
  %s29 = sld [smem:[%s28]]
  %s30 = scalar_lea.smem %s0, 15
  %s31 = sld [smem:[%s30]]
  %s32 = scalar_lea.smem %s0, 16
  %s33 = sld [smem:[%s32]]
  %s34 = scalar_lea.smem %s0, 17
  %s35 = sld [smem:[%s34]]
  %s36 = scalar_lea.smem %s0, 18
  %s37 = sld [smem:[%s36]]
  %s38 = scalar_lea.smem %s0, 19
  %s39 = sld [smem:[%s38]]
  %s40 = scalar_lea.smem %s0, 20
  %s41 = sld [smem:[%s40]]
  %s42 = scalar_lea.smem %s0, 21
  %s43 = sld [smem:[%s42]]
  %s44 = scalar_lea.smem %s0, 22
  %s45 = sld [smem:[%s44]]
  %s46 = scalar_lea.smem %s0, 23
  %s47 = sld [smem:[%s46]]
  %s48 = scalar_lea.smem %s0, 24
  %s49 = sld [smem:[%s48]]
  %s50 = scalar_lea.smem %s0, 25
  %s51 = sld [smem:[%s50]]
  %s52 = scalar_lea.smem %s0, 26
  %s53 = sld [smem:[%s52]]
  %s54 = scalar_lea.smem %s0, 27
  %s55 = sld [smem:[%s54]]
  %s56 = scalar_lea.smem %s0, 28
  %s57 = sld [smem:[%s56]]
  %s58 = scalar_lea.smem %s0, 29
  %s59 = sld [smem:[%s58]]
  %s60 = scalar_lea.smem %s0, 30
  %s61 = sld [smem:[%s60]]
  %s62 = scalar_lea.smem %s0, 31
  %s63 = sld [smem:[%s62]]
  %s64 = scalar_lea.smem %s0, 32
  %s65 = sld [smem:[%s64]]
  %s66 = scalar_lea.smem %s0, 33
  %s67 = sld [smem:[%s66]]
  %s68 = scalar_lea.smem %s0, 34
  %s69 = sld [smem:[%s68]]
  %s70 = scalar_lea.smem %s0, 35
  %s71 = sld [smem:[%s70]]
  %s72 = scalar_lea.smem %s0, 36
  %s73 = sld [smem:[%s72]]
  %s74 = scalar_lea.smem %s0, 37
  %s75 = sld [smem:[%s74]]
  %s76 = sld [smem:[#allocation0]]
  $region158: #{minn_forward.1} parent=0
    _
  %s78 = ssub.s32 1, %s76
  %s79 = scalar_select 0, %s78, %s76
  $region1: #{minn_forward.1} parent=0
    #allocation2 [shape = 'u8[4096]{0}', space=vmem, size = 0x1000, scoped, tag = 'output window, operand 0, single buffered']
    #allocation3 [shape = 's32[1]{0}', space=sflag, size = 0x4, scoped, tag = 'scoped memory for minn_forward.1']
    %80 = vsyncpa [#allocation3], 0
    // Predicated region
    $region2: #{minn_forward.1} parent=1 // pred_check
      _
    $region3: #{minn_forward.1} parent=1 // pred_check_branch
      %82 = sbr.rel (0) target = $region5
    $region4: #{minn_forward.1} parent=1 // pred_region
      _
    $region5: #{minn_forward.1} parent=1 // pred_fallthru
      _
    // Predicated region
    $region6: #{minn_forward.1} parent=1 // pred_check
      _
    $region7: #{minn_forward.1} parent=1 // pred_check_branch
      %84 = sbr.rel (0) target = $region9
    $region8: #{minn_forward.1} parent=1 // pred_region
      _
    $region9: #{minn_forward.1} parent=1 // pred_fallthru
      _
    // Predicated region
    $region10: #{minn_forward.1} parent=1 // pred_check
      _
    $region11: #{minn_forward.1} parent=1 // pred_check_branch
      %86 = sbr.rel (0) target = $region13
    $region12: #{minn_forward.1} parent=1 // pred_region
      _
    $region13: #{minn_forward.1} parent=1 // pred_fallthru
      _
    // Predicated region
    $region14: #{minn_forward.1} parent=1 // pred_check
      _
    $region15: #{minn_forward.1} parent=1 // pred_check_branch
      %88 = sbr.rel (0) target = $region17
    $region16: #{minn_forward.1} parent=1 // pred_region
      _
    $region17: #{minn_forward.1} parent=1 // pred_fallthru
      _
    // Predicated region
    $region18: #{minn_forward.1} parent=1 // pred_check
      _
    $region19: #{minn_forward.1} parent=1 // pred_check_branch
      %90 = sbr.rel (0) target = $region21
    $region20: #{minn_forward.1} parent=1 // pred_region
      _
    $region21: #{minn_forward.1} parent=1 // pred_fallthru
      _
    // Predicated region
    $region22: #{minn_forward.1} parent=1 // pred_check
      _
    $region23: #{minn_forward.1} parent=1 // pred_check_branch
      %92 = sbr.rel (0) target = $region25
    $region24: #{minn_forward.1} parent=1 // pred_region
      _
    $region25: #{minn_forward.1} parent=1 // pred_fallthru
      _
    // Predicated region
    $region26: #{minn_forward.1} parent=1 // pred_check
      _
    $region27: #{minn_forward.1} parent=1 // pred_check_branch
      %94 = sbr.rel (0) target = $region29
    $region28: #{minn_forward.1} parent=1 // pred_region
      _
    $region29: #{minn_forward.1} parent=1 // pred_fallthru
      _
    // Predicated region
    $region30: #{minn_forward.1} parent=1 // pred_check
      _
    $region31: #{minn_forward.1} parent=1 // pred_check_branch
      %96 = sbr.rel (0) target = $region33
    $region32: #{minn_forward.1} parent=1 // pred_region
      _
    $region33: #{minn_forward.1} parent=1 // pred_fallthru
      _
    // Predicated region
    $region34: #{minn_forward.1} parent=1 // pred_check
      _
    $region35: #{minn_forward.1} parent=1 // pred_check_branch
      %98 = sbr.rel (0) target = $region37
    $region36: #{minn_forward.1} parent=1 // pred_region
      _
    $region37: #{minn_forward.1} parent=1 // pred_fallthru
      _
    // Predicated region
    $region38: #{minn_forward.1} parent=1 // pred_check
      _
    $region39: #{minn_forward.1} parent=1 // pred_check_branch
      %100 = sbr.rel (0) target = $region41
    $region40: #{minn_forward.1} parent=1 // pred_region
      _
    $region41: #{minn_forward.1} parent=1 // pred_fallthru
      _
    // Predicated region
    $region42: #{minn_forward.1} parent=1 // pred_check
      _
    $region43: #{minn_forward.1} parent=1 // pred_check_branch
      %102 = sbr.rel (0) target = $region45
    $region44: #{minn_forward.1} parent=1 // pred_region
      _
    $region45: #{minn_forward.1} parent=1 // pred_fallthru
      _
    // Predicated region
    $region46: #{minn_forward.1} parent=1 // pred_check
      _
    $region47: #{minn_forward.1} parent=1 // pred_check_branch
      %104 = sbr.rel (0) target = $region49
    $region48: #{minn_forward.1} parent=1 // pred_region
      _
    $region49: #{minn_forward.1} parent=1 // pred_fallthru
      _
    // Predicated region
    $region50: #{minn_forward.1} parent=1 // pred_check
      _
    $region51: #{minn_forward.1} parent=1 // pred_check_branch
      %106 = sbr.rel (0) target = $region53
    $region52: #{minn_forward.1} parent=1 // pred_region
      _
    $region53: #{minn_forward.1} parent=1 // pred_fallthru
      _
    // Predicated region
    $region54: #{minn_forward.1} parent=1 // pred_check
      _
    $region55: #{minn_forward.1} parent=1 // pred_check_branch
      %108 = sbr.rel (0) target = $region57
    $region56: #{minn_forward.1} parent=1 // pred_region
      _
    $region57: #{minn_forward.1} parent=1 // pred_fallthru
      _
    // Predicated region
    $region58: #{minn_forward.1} parent=1 // pred_check
      _
    $region59: #{minn_forward.1} parent=1 // pred_check_branch
      %110 = sbr.rel (0) target = $region61
    $region60: #{minn_forward.1} parent=1 // pred_region
      _
    $region61: #{minn_forward.1} parent=1 // pred_fallthru
      _
    // Predicated region
    $region62: #{minn_forward.1} parent=1 // pred_check
      _
    $region63: #{minn_forward.1} parent=1 // pred_check_branch
      %112 = sbr.rel (0) target = $region65
    $region64: #{minn_forward.1} parent=1 // pred_region
      _
    $region65: #{minn_forward.1} parent=1 // pred_fallthru
      _
    // Predicated region
    $region66: #{minn_forward.1} parent=1 // pred_check
      _
    $region67: #{minn_forward.1} parent=1 // pred_check_branch
      %114 = sbr.rel (0) target = $region69
    $region68: #{minn_forward.1} parent=1 // pred_region
      _
    $region69: #{minn_forward.1} parent=1 // pred_fallthru
      _
    // Predicated region
    $region70: #{minn_forward.1} parent=1 // pred_check
      _
    $region71: #{minn_forward.1} parent=1 // pred_check_branch
      %116 = sbr.rel (0) target = $region73
    $region72: #{minn_forward.1} parent=1 // pred_region
      _
    $region73: #{minn_forward.1} parent=1 // pred_fallthru
      _
    // Predicated region
    $region74: #{minn_forward.1} parent=1 // pred_check
      _
    $region75: #{minn_forward.1} parent=1 // pred_check_branch
      %118 = sbr.rel (0) target = $region77
    $region76: #{minn_forward.1} parent=1 // pred_region
      _
    $region77: #{minn_forward.1} parent=1 // pred_fallthru
      _
    // Predicated region
    $region78: #{minn_forward.1} parent=1 // pred_check
      _
    $region79: #{minn_forward.1} parent=1 // pred_check_branch
      %120 = sbr.rel (0) target = $region81
    $region80: #{minn_forward.1} parent=1 // pred_region
      _
    $region81: #{minn_forward.1} parent=1 // pred_fallthru
      _
    // Predicated region
    $region82: #{minn_forward.1} parent=1 // pred_check
      _
    $region83: #{minn_forward.1} parent=1 // pred_check_branch
      %122 = sbr.rel (0) target = $region85
    $region84: #{minn_forward.1} parent=1 // pred_region
      _
    $region85: #{minn_forward.1} parent=1 // pred_fallthru
      _
    // Predicated region
    $region86: #{minn_forward.1} parent=1 // pred_check
      _
    $region87: #{minn_forward.1} parent=1 // pred_check_branch
      %124 = sbr.rel (0) target = $region89
    $region88: #{minn_forward.1} parent=1 // pred_region
      _
    $region89: #{minn_forward.1} parent=1 // pred_fallthru
      _
    // Predicated region
    $region90: #{minn_forward.1} parent=1 // pred_check
      _
    $region91: #{minn_forward.1} parent=1 // pred_check_branch
      %126 = sbr.rel (0) target = $region93
    $region92: #{minn_forward.1} parent=1 // pred_region
      _
    $region93: #{minn_forward.1} parent=1 // pred_fallthru
      _
    // Predicated region
    $region94: #{minn_forward.1} parent=1 // pred_check
      _
    $region95: #{minn_forward.1} parent=1 // pred_check_branch
      %128 = sbr.rel (0) target = $region97
    $region96: #{minn_forward.1} parent=1 // pred_region
      _
    $region97: #{minn_forward.1} parent=1 // pred_fallthru
      _
    // Predicated region
    $region98: #{minn_forward.1} parent=1 // pred_check
      _
    $region99: #{minn_forward.1} parent=1 // pred_check_branch
      %130 = sbr.rel (0) target = $region101
    $region100: #{minn_forward.1} parent=1 // pred_region
      _
    $region101: #{minn_forward.1} parent=1 // pred_fallthru
      _
    // Predicated region
    $region102: #{minn_forward.1} parent=1 // pred_check
      _
    $region103: #{minn_forward.1} parent=1 // pred_check_branch
      %132 = sbr.rel (0) target = $region105
    $region104: #{minn_forward.1} parent=1 // pred_region
      _
    $region105: #{minn_forward.1} parent=1 // pred_fallthru
      _
    // Predicated region
    $region106: #{minn_forward.1} parent=1 // pred_check
      _
    $region107: #{minn_forward.1} parent=1 // pred_check_branch
      %134 = sbr.rel (0) target = $region109
    $region108: #{minn_forward.1} parent=1 // pred_region
      _
    $region109: #{minn_forward.1} parent=1 // pred_fallthru
      _
    // Predicated region
    $region110: #{minn_forward.1} parent=1 // pred_check
      _
    $region111: #{minn_forward.1} parent=1 // pred_check_branch
      %136 = sbr.rel (0) target = $region113
    $region112: #{minn_forward.1} parent=1 // pred_region
      _
    $region113: #{minn_forward.1} parent=1 // pred_fallthru
      _
    // Predicated region
    $region114: #{minn_forward.1} parent=1 // pred_check
      _
    $region115: #{minn_forward.1} parent=1 // pred_check_branch
      %138 = sbr.rel (0) target = $region117
    $region116: #{minn_forward.1} parent=1 // pred_region
      _
    $region117: #{minn_forward.1} parent=1 // pred_fallthru
      _
    // Predicated region
    $region118: #{minn_forward.1} parent=1 // pred_check
      _
    $region119: #{minn_forward.1} parent=1 // pred_check_branch
      %140 = sbr.rel (0) target = $region121
    $region120: #{minn_forward.1} parent=1 // pred_region
      _
    $region121: #{minn_forward.1} parent=1 // pred_fallthru
      _
    // Predicated region
    $region122: #{minn_forward.1} parent=1 // pred_check
      _
    $region123: #{minn_forward.1} parent=1 // pred_check_branch
      %142 = sbr.rel (0) target = $region125
    $region124: #{minn_forward.1} parent=1 // pred_region
      _
    $region125: #{minn_forward.1} parent=1 // pred_fallthru
      _
    // Predicated region
    $region126: #{minn_forward.1} parent=1 // pred_check
      _
    $region127: #{minn_forward.1} parent=1 // pred_check_branch
      %144 = sbr.rel (0) target = $region129
    $region128: #{minn_forward.1} parent=1 // pred_region
      _
    $region129: #{minn_forward.1} parent=1 // pred_fallthru
      _
    // Predicated region
    $region130: #{minn_forward.1} parent=1 // pred_check
      _
    $region131: #{minn_forward.1} parent=1 // pred_check_branch
      %146 = sbr.rel (0) target = $region133
    $region132: #{minn_forward.1} parent=1 // pred_region
      _
    $region133: #{minn_forward.1} parent=1 // pred_fallthru
      _
    // Predicated region
    $region134: #{minn_forward.1} parent=1 // pred_check
      _
    $region135: #{minn_forward.1} parent=1 // pred_check_branch
      %148 = sbr.rel (0) target = $region137
    $region136: #{minn_forward.1} parent=1 // pred_region
      _
    $region137: #{minn_forward.1} parent=1 // pred_fallthru
      _
    // Predicated region
    $region138: #{minn_forward.1} parent=1 // pred_check
      _
    $region139: #{minn_forward.1} parent=1 // pred_check_branch
      %150 = sbr.rel (0) target = $region141
    $region140: #{minn_forward.1} parent=1 // pred_region
      _
    $region141: #{minn_forward.1} parent=1 // pred_fallthru
      _
    // Predicated region
    $region142: #{minn_forward.1} parent=1 // pred_check
      _
    $region143: #{minn_forward.1} parent=1 // pred_check_branch
      %152 = sbr.rel (0) target = $region145
    $region144: #{minn_forward.1} parent=1 // pred_region
      _
    $region145: #{minn_forward.1} parent=1 // pred_fallthru
      _
    // Predicated region
    $region146: #{minn_forward.1} parent=1 // pred_check
      _
    $region147: #{minn_forward.1} parent=1 // pred_check_branch
      %154 = sbr.rel (0) target = $region149
    $region148: #{minn_forward.1} parent=1 // pred_region
      _
    $region149: #{minn_forward.1} parent=1 // pred_fallthru
      _
    %v155 = vld [vmem:[%s1] sm:$0xff]
    %v156 = vld [vmem:[%s3] sm:$0xf]
    %v157 = vld [vmem:[%s3 + $0x4] sm:$0xf]
    %v158 = vld [vmem:[%s3 + $0x8] sm:$0xf]
    %v159 = vld [vmem:[%s3 + $0xc] sm:$0xf]
    %v160 = vld [vmem:[%s3 + $0x10] sm:$0xf]
    %v161 = vld [vmem:[%s3 + $0x14] sm:$0xf]
    %v162 = vld [vmem:[%s3 + $0x18] sm:$0xf]
    %v163 = vld [vmem:[%s3 + $0x1c] sm:$0xf]
    %v164 = vunpack.c.l.bf16 %v156
    %v165 = vunpack.c.l.bf16 %v157
    %v166 = vunpack.c.l.bf16 %v158
    %v167 = vunpack.c.l.bf16 %v159
    %v168 = vunpack.c.l.bf16 %v160
    %v169 = vunpack.c.l.bf16 %v161
    %v170 = vunpack.c.l.bf16 %v162
    %v171 = vunpack.c.l.bf16 %v163
    %v172 = vld [vmem:[%s5] sm:$0x1]
    %v174 = vlaneseq
    %v175 = vshrl.u32 %v174, 7
    %v176 = vsub.s32 0, %v175
    %v177 = vrot.slane %v172, %v176
    %vm179 = vcmask 523264
    %v181 = vsel %vm179, %v155, 0
    %183 = vmatprep.subr.mxu0 0.0
    %184 = vmatpush1.msra.mxu0 0.0
    %185 = vmatprep.subr.mxu0 0.0
    %186 = vmatpush1.msra.mxu0 0.0
    %187 = vmatprep.subr.mxu0 0.0
    %188 = vmatpush1.msra.mxu0 0.0
    %189 = vmatprep.subr.mxu0 0.0
    %190 = vmatpush1.msra.mxu0 0.0
    %191 = vmatprep.subr.mxu0 0.0
    %192 = vmatpush1.msra.mxu0 0.0
    %193 = vmatprep.subr.mxu0 0.0
    %194 = vmatpush1.msra.mxu0 0.0
    %195 = vmatprep.subr.mxu0 0.0
    %196 = vmatpush1.msra.mxu0 0.0
    %197 = vmatprep.subr.mxu0 0.0
    %198 = vmatpush1.msra.mxu0 0.0
    %199 = vmatprep.subr.mxu0 0.0
    %200 = vmatpush1.msra.mxu0 %v171
    %201 = vmatprep.subr.mxu0 0.0
    %202 = vmatpush1.msra.mxu0 %v170
    %203 = vmatprep.subr.mxu0 0.0
    %204 = vmatpush1.msra.mxu0 %v169
    %205 = vmatprep.subr.mxu0 0.0
    %206 = vmatpush1.msra.mxu0 %v168
    %207 = vmatprep.subr.mxu0 0.0
    %208 = vmatpush1.msra.mxu0 %v167
    %209 = vmatprep.subr.mxu0 0.0
    %210 = vmatpush1.msra.mxu0 %v166
    %211 = vmatprep.subr.mxu0 0.0
    %212 = vmatpush1.msra.mxu0 %v165
    %213 = vmatprep.subr.mxu0 0.0
    %214 = vmatpush1.msra.mxu0 %v164
    %215 = vmatprep.subr.mxu0 0.0
    %216 = vmatpush2.msra.mxu0 0.0
    %217 = vmatprep.subr.mxu0 0.0
    %218 = vmatpush2.msra.mxu0 0.0
    %219 = vmatprep.subr.mxu0 0.0
    %220 = vmatpush2.msra.mxu0 0.0
    %221 = vmatprep.subr.mxu0 0.0
    %222 = vmatpush2.msra.mxu0 0.0
    %223 = vmatprep.subr.mxu0 0.0
    %224 = vmatpush2.msra.mxu0 0.0
    %225 = vmatprep.subr.mxu0 0.0
    %226 = vmatpush2.msra.mxu0 0.0
    %227 = vmatprep.subr.mxu0 0.0
    %228 = vmatpush2.msra.mxu0 0.0
    %229 = vmatprep.subr.mxu0 0.0
    %230 = vmatpush2.msra.mxu0 0.0
    %231 = vmatprep.subr.mxu0 0.0
    %232 = vmatpush2.msra.mxu0 0.0
    %233 = vmatprep.subr.mxu0 0.0
    %234 = vmatpush2.msra.mxu0 0.0
    %235 = vmatprep.subr.mxu0 0.0
    %236 = vmatpush2.msra.mxu0 0.0
    %237 = vmatprep.subr.mxu0 0.0
    %238 = vmatpush2.msra.mxu0 0.0
    %239 = vmatprep.subr.mxu0 0.0
    %240 = vmatpush2.msra.mxu0 0.0
    %241 = vmatprep.subr.mxu0 0.0
    %242 = vmatpush2.msra.mxu0 0.0
    %243 = vmatprep.subr.mxu0 0.0
    %244 = vmatpush2.msra.mxu0 0.0
    %245 = vmatprep.subr.mxu0 0.0
    %246 = vmatpush2.msra.mxu0 0.0
    %247 = vmatprep.mubr.f32.mxu0 0.0
    %248 = vmatmul.mubr.f32.gmra.mxu0 %v181
    %v249 = vpop.f32.mrf.mxu0
    %v250 = vadd.f32 %v177, %v249
    %v251 = vpop.f32.mrf.mxu0
    %252 = vdwg.mxu0
    %v253 = vsel %vm179, %v250, 0.0
    %254 = vadd.xlane.f32.xlu0 %v253
    %v255 = vpop.xlane.xlu0 %254
    %v256 = vrcp.pop 64.0
    %v257 = vmul.f32 %v255, %v256
    %v258 = vsub.f32 %v250, %v257
    %v259 = vmul.f32 %v258, %v258
    %v260 = vsel %vm179, %v259, 0.0
    %261 = vadd.xlane.f32.xlu0 %v260
    %v262 = vpop.xlane.xlu0 %261
    %v263 = vmul.f32 %v262, %v256
    %v264 = vadd.f32 %v263, 1e-05
    %v265 = vrsqrt.pop %v264
    %v266 = vmul.f32 %v258, %v265
    %v267 = vld [vmem:[%s7] sm:$0x1]
    %v269 = vlaneseq
    %v270 = vshrl.u32 %v269, 7
    %v271 = vsub.s32 0, %v270
    %v272 = vrot.slane %v267, %v271
    %v274 = vmul.f32 %v266, %v272
    %v275 = vld [vmem:[%s9] sm:$0x1]
    %v277 = vlaneseq
    %v278 = vshrl.u32 %v277, 7
    %v279 = vsub.s32 0, %v278
    %v280 = vrot.slane %v275, %v279
    %v282 = vadd.f32 %v274, %v280
    %v283 = vld [vmem:[%s11] sm:$0xf]
    %v284 = vld [vmem:[%s11 + $0x4] sm:$0xf]
    %v285 = vld [vmem:[%s11 + $0x8] sm:$0xf]
    %v286 = vld [vmem:[%s11 + $0xc] sm:$0xf]
    %v287 = vld [vmem:[%s11 + $0x10] sm:$0xf]
    %v288 = vld [vmem:[%s11 + $0x14] sm:$0xf]
    %v289 = vld [vmem:[%s11 + $0x18] sm:$0xf]
    %v290 = vld [vmem:[%s11 + $0x1c] sm:$0xf]
    %v291 = vunpack.c.l.bf16 %v283
    %v292 = vunpack.c.l.bf16 %v284
    %v293 = vunpack.c.l.bf16 %v285
    %v294 = vunpack.c.l.bf16 %v286
    %v295 = vunpack.c.l.bf16 %v287
    %v296 = vunpack.c.l.bf16 %v288
    %v297 = vunpack.c.l.bf16 %v289
    %v298 = vunpack.c.l.bf16 %v290
    %v299 = vld [vmem:[%s13] sm:$0x1]
    %v301 = vlaneseq
    %v302 = vshrl.u32 %v301, 7
    %v303 = vsub.s32 0, %v302
    %v304 = vrot.slane %v299, %v303
    %v307 = vsel %vm179, %v282, 0
    %309 = vmatprep.subr.mxu0 0.0
    %310 = vmatpush1.msra.mxu0 0.0
    %311 = vmatprep.subr.mxu0 0.0
    %312 = vmatpush1.msra.mxu0 0.0
    %313 = vmatprep.subr.mxu0 0.0
    %314 = vmatpush1.msra.mxu0 0.0
    %315 = vmatprep.subr.mxu0 0.0
    %316 = vmatpush1.msra.mxu0 0.0
    %317 = vmatprep.subr.mxu0 0.0
    %318 = vmatpush1.msra.mxu0 0.0
    %319 = vmatprep.subr.mxu0 0.0
    %320 = vmatpush1.msra.mxu0 0.0
    %321 = vmatprep.subr.mxu0 0.0
    %322 = vmatpush1.msra.mxu0 0.0
    %323 = vmatprep.subr.mxu0 0.0
    %324 = vmatpush1.msra.mxu0 0.0
    %325 = vmatprep.subr.mxu0 0.0
    %326 = vmatpush1.msra.mxu0 %v298
    %327 = vmatprep.subr.mxu0 0.0
    %328 = vmatpush1.msra.mxu0 %v297
    %329 = vmatprep.subr.mxu0 0.0
    %330 = vmatpush1.msra.mxu0 %v296
    %331 = vmatprep.subr.mxu0 0.0
    %332 = vmatpush1.msra.mxu0 %v295
    %333 = vmatprep.subr.mxu0 0.0
    %334 = vmatpush1.msra.mxu0 %v294
    %335 = vmatprep.subr.mxu0 0.0
    %336 = vmatpush1.msra.mxu0 %v293
    %337 = vmatprep.subr.mxu0 0.0
    %338 = vmatpush1.msra.mxu0 %v292
    %339 = vmatprep.subr.mxu0 0.0
    %340 = vmatpush1.msra.mxu0 %v291
    %341 = vmatprep.subr.mxu0 0.0
    %342 = vmatpush2.msra.mxu0 0.0
    %343 = vmatprep.subr.mxu0 0.0
    %344 = vmatpush2.msra.mxu0 0.0
    %345 = vmatprep.subr.mxu0 0.0
    %346 = vmatpush2.msra.mxu0 0.0
    %347 = vmatprep.subr.mxu0 0.0
    %348 = vmatpush2.msra.mxu0 0.0
    %349 = vmatprep.subr.mxu0 0.0
    %350 = vmatpush2.msra.mxu0 0.0
    %351 = vmatprep.subr.mxu0 0.0
    %352 = vmatpush2.msra.mxu0 0.0
    %353 = vmatprep.subr.mxu0 0.0
    %354 = vmatpush2.msra.mxu0 0.0
    %355 = vmatprep.subr.mxu0 0.0
    %356 = vmatpush2.msra.mxu0 0.0
    %357 = vmatprep.subr.mxu0 0.0
    %358 = vmatpush2.msra.mxu0 0.0
    %359 = vmatprep.subr.mxu0 0.0
    %360 = vmatpush2.msra.mxu0 0.0
    %361 = vmatprep.subr.mxu0 0.0
    %362 = vmatpush2.msra.mxu0 0.0
    %363 = vmatprep.subr.mxu0 0.0
    %364 = vmatpush2.msra.mxu0 0.0
    %365 = vmatprep.subr.mxu0 0.0
    %366 = vmatpush2.msra.mxu0 0.0
    %367 = vmatprep.subr.mxu0 0.0
    %368 = vmatpush2.msra.mxu0 0.0
    %369 = vmatprep.subr.mxu0 0.0
    %370 = vmatpush2.msra.mxu0 0.0
    %371 = vmatprep.subr.mxu0 0.0
    %372 = vmatpush2.msra.mxu0 0.0
    %373 = vmatprep.mubr.f32.mxu0 0.0
    %374 = vmatmul.mubr.f32.gmra.mxu0 %v307
    %v375 = vpop.f32.mrf.mxu0
    %v376 = vadd.f32 %v304, %v375
    %v377 = vpop.f32.mrf.mxu0
    %378 = vdwg.mxu0
    %v379 = vld [vmem:[%s17] sm:$0x1]
    %v380 = vld [vmem:[%s15] sm:$0xf]
    %v381 = vld [vmem:[%s15 + $0x4] sm:$0xf]
    %v382 = vld [vmem:[%s15 + $0x8] sm:$0xf]
    %v383 = vld [vmem:[%s15 + $0xc] sm:$0xf]
    %v384 = vld [vmem:[%s15 + $0x10] sm:$0xf]
    %v385 = vld [vmem:[%s15 + $0x14] sm:$0xf]
    %v386 = vld [vmem:[%s15 + $0x18] sm:$0xf]
    %v387 = vld [vmem:[%s15 + $0x1c] sm:$0xf]
    %v388 = vunpack.c.l.bf16 %v380
    %v389 = vunpack.c.l.bf16 %v381
    %v390 = vunpack.c.l.bf16 %v382
    %v391 = vunpack.c.l.bf16 %v383
    %v392 = vunpack.c.l.bf16 %v384
    %v393 = vunpack.c.l.bf16 %v385
    %v394 = vunpack.c.l.bf16 %v386
    %v395 = vunpack.c.l.bf16 %v387
    %v397 = vsel %vm179, %v376, 0
    %399 = vmatprep.subr.mxu0 0.0
    %400 = vmatpush1.msra.mxu0 0.0
    %401 = vmatprep.subr.mxu0 0.0
    %402 = vmatpush1.msra.mxu0 0.0
    %403 = vmatprep.subr.mxu0 0.0
    %404 = vmatpush1.msra.mxu0 0.0
    %405 = vmatprep.subr.mxu0 0.0
    %406 = vmatpush1.msra.mxu0 0.0
    %407 = vmatprep.subr.mxu0 0.0
    %408 = vmatpush1.msra.mxu0 0.0
    %409 = vmatprep.subr.mxu0 0.0
    %410 = vmatpush1.msra.mxu0 0.0
    %411 = vmatprep.subr.mxu0 0.0
    %412 = vmatpush1.msra.mxu0 0.0
    %413 = vmatprep.subr.mxu0 0.0
    %414 = vmatpush1.msra.mxu0 0.0
    %415 = vmatprep.subr.mxu0 0.0
    %416 = vmatpush1.msra.mxu0 %v395
    %417 = vmatprep.subr.mxu0 0.0
    %418 = vmatpush1.msra.mxu0 %v394
    %419 = vmatprep.subr.mxu0 0.0
    %420 = vmatpush1.msra.mxu0 %v393
    %421 = vmatprep.subr.mxu0 0.0
    %422 = vmatpush1.msra.mxu0 %v392
    %423 = vmatprep.subr.mxu0 0.0
    %424 = vmatpush1.msra.mxu0 %v391
    %425 = vmatprep.subr.mxu0 0.0
    %426 = vmatpush1.msra.mxu0 %v390
    %427 = vmatprep.subr.mxu0 0.0
    %428 = vmatpush1.msra.mxu0 %v389
    %429 = vmatprep.subr.mxu0 0.0
    %430 = vmatpush1.msra.mxu0 %v388
    %431 = vmatprep.subr.mxu0 0.0
    %432 = vmatpush2.msra.mxu0 0.0
    %433 = vmatprep.subr.mxu0 0.0
    %434 = vmatpush2.msra.mxu0 0.0
    %435 = vmatprep.subr.mxu0 0.0
    %436 = vmatpush2.msra.mxu0 0.0
    %437 = vmatprep.subr.mxu0 0.0
    %438 = vmatpush2.msra.mxu0 0.0
    %439 = vmatprep.subr.mxu0 0.0
    %440 = vmatpush2.msra.mxu0 0.0
    %441 = vmatprep.subr.mxu0 0.0
    %442 = vmatpush2.msra.mxu0 0.0
    %443 = vmatprep.subr.mxu0 0.0
    %444 = vmatpush2.msra.mxu0 0.0
    %445 = vmatprep.subr.mxu0 0.0
    %446 = vmatpush2.msra.mxu0 0.0
    %447 = vmatprep.subr.mxu0 0.0
    %448 = vmatpush2.msra.mxu0 0.0
    %449 = vmatprep.subr.mxu0 0.0
    %450 = vmatpush2.msra.mxu0 0.0
    %451 = vmatprep.subr.mxu0 0.0
    %452 = vmatpush2.msra.mxu0 0.0
    %453 = vmatprep.subr.mxu0 0.0
    %454 = vmatpush2.msra.mxu0 0.0
    %455 = vmatprep.subr.mxu0 0.0
    %456 = vmatpush2.msra.mxu0 0.0
    %457 = vmatprep.subr.mxu0 0.0
    %458 = vmatpush2.msra.mxu0 0.0
    %459 = vmatprep.subr.mxu0 0.0
    %460 = vmatpush2.msra.mxu0 0.0
    %461 = vmatprep.subr.mxu0 0.0
    %462 = vmatpush2.msra.mxu0 0.0
    %463 = vmatprep.mubr.f32.mxu0 0.0
    %464 = vmatmul.mubr.f32.gmra.mxu0 %v397
    %v465 = vpop.f32.mrf.mxu0
    %v466 = vadd.f32 0.0, %v465
    %v467 = vpop.f32.mrf.mxu0
    %468 = vdwg.mxu0
    %v470 = vlaneseq
    %v471 = vshrl.u32 %v470, 7
    %v472 = vsub.s32 0, %v471
    %v473 = vrot.slane %v379, %v472
    %v475 = vadd.f32 %v473, %v466
    %v476 = vmax.f32 %v475, 0.0
    %v477 = vrot.slane %v476, 4
    %v478 = vadd.f32 %v476, %v477
    %v479 = vrot.slane %v478, 2
    %v480 = vadd.f32 %v478, %v479
    %v481 = vrot.slane %v480, 1
    %v482 = vadd.f32 %v480, %v481
    %v483 = vrcp.pop 8.0
    %v484 = vmul.f32 %v482, %v483
    %v485 = vsub.f32 %v476, %v484
    %v486 = vmul.f32 %v485, %v485
    %v487 = vrot.slane %v486, 4
    %v488 = vadd.f32 %v486, %v487
    %v489 = vrot.slane %v488, 2
    %v490 = vadd.f32 %v488, %v489
    %v491 = vrot.slane %v490, 1
    %v492 = vadd.f32 %v490, %v491
    %v493 = vmul.f32 %v492, %v483
    %v494 = vadd.f32 %v493, 1e-05
    %v495 = vrsqrt.pop %v494
    %v496 = vmul.f32 %v485, %v495
    %v497 = vld [vmem:[%s19] sm:$0x1]
    %v499 = vlaneseq
    %v500 = vshrl.u32 %v499, 7
    %v501 = vsub.s32 0, %v500
    %v502 = vrot.slane %v497, %v501
    %v504 = vmul.f32 %v496, %v502
    %v505 = vld [vmem:[%s21] sm:$0x1]
    %v507 = vlaneseq
    %v508 = vshrl.u32 %v507, 7
    %v509 = vsub.s32 0, %v508
    %v510 = vrot.slane %v505, %v509
    %v512 = vadd.f32 %v504, %v510
    %v513 = vld [vmem:[%s27] sm:$0x1]
    %v514 = vld [vmem:[%s23] sm:$0xf]
    %v515 = vld [vmem:[%s23 + $0x4] sm:$0xf]
    %v516 = vld [vmem:[%s23 + $0x8] sm:$0xf]
    %v517 = vld [vmem:[%s23 + $0xc] sm:$0xf]
    %v518 = vld [vmem:[%s23 + $0x10] sm:$0xf]
    %v519 = vld [vmem:[%s23 + $0x14] sm:$0xf]
    %v520 = vld [vmem:[%s23 + $0x18] sm:$0xf]
    %v521 = vld [vmem:[%s23 + $0x1c] sm:$0xf]
    %v522 = vunpack.c.l.bf16 %v514
    %v523 = vunpack.c.l.bf16 %v515
    %v524 = vunpack.c.l.bf16 %v516
    %v525 = vunpack.c.l.bf16 %v517
    %v526 = vunpack.c.l.bf16 %v518
    %v527 = vunpack.c.l.bf16 %v519
    %v528 = vunpack.c.l.bf16 %v520
    %v529 = vunpack.c.l.bf16 %v521
    %530 = vmatprep.subr.mxu0 0.0
    %531 = vmatpush1.msra.mxu0 0.0
    %532 = vmatprep.subr.mxu0 0.0
    %533 = vmatpush1.msra.mxu0 0.0
    %534 = vmatprep.subr.mxu0 0.0
    %535 = vmatpush1.msra.mxu0 0.0
    %536 = vmatprep.subr.mxu0 0.0
    %537 = vmatpush1.msra.mxu0 0.0
    %538 = vmatprep.subr.mxu0 0.0
    %539 = vmatpush1.msra.mxu0 0.0
    %540 = vmatprep.subr.mxu0 0.0
    %541 = vmatpush1.msra.mxu0 0.0
    %542 = vmatprep.subr.mxu0 0.0
    %543 = vmatpush1.msra.mxu0 0.0
    %544 = vmatprep.subr.mxu0 0.0
    %545 = vmatpush1.msra.mxu0 0.0
    %546 = vmatprep.subr.mxu0 0.0
    %547 = vmatpush1.msra.mxu0 %v529
    %548 = vmatprep.subr.mxu0 0.0
    %549 = vmatpush1.msra.mxu0 %v528
    %550 = vmatprep.subr.mxu0 0.0
    %551 = vmatpush1.msra.mxu0 %v527
    %552 = vmatprep.subr.mxu0 0.0
    %553 = vmatpush1.msra.mxu0 %v526
    %554 = vmatprep.subr.mxu0 0.0
    %555 = vmatpush1.msra.mxu0 %v525
    %556 = vmatprep.subr.mxu0 0.0
    %557 = vmatpush1.msra.mxu0 %v524
    %558 = vmatprep.subr.mxu0 0.0
    %559 = vmatpush1.msra.mxu0 %v523
    %560 = vmatprep.subr.mxu0 0.0
    %561 = vmatpush1.msra.mxu0 %v522
    %562 = vmatprep.subr.mxu0 0.0
    %563 = vmatpush2.msra.mxu0 0.0
    %564 = vmatprep.subr.mxu0 0.0
    %565 = vmatpush2.msra.mxu0 0.0
    %566 = vmatprep.subr.mxu0 0.0
    %567 = vmatpush2.msra.mxu0 0.0
    %568 = vmatprep.subr.mxu0 0.0
    %569 = vmatpush2.msra.mxu0 0.0
    %570 = vmatprep.subr.mxu0 0.0
    %571 = vmatpush2.msra.mxu0 0.0
    %572 = vmatprep.subr.mxu0 0.0
    %573 = vmatpush2.msra.mxu0 0.0
    %574 = vmatprep.subr.mxu0 0.0
    %575 = vmatpush2.msra.mxu0 0.0
    %576 = vmatprep.subr.mxu0 0.0
    %577 = vmatpush2.msra.mxu0 0.0
    %578 = vmatprep.subr.mxu0 0.0
    %579 = vmatpush2.msra.mxu0 0.0
    %580 = vmatprep.subr.mxu0 0.0
    %581 = vmatpush2.msra.mxu0 0.0
    %582 = vmatprep.subr.mxu0 0.0
    %583 = vmatpush2.msra.mxu0 0.0
    %584 = vmatprep.subr.mxu0 0.0
    %585 = vmatpush2.msra.mxu0 0.0
    %586 = vmatprep.subr.mxu0 0.0
    %587 = vmatpush2.msra.mxu0 0.0
    %588 = vmatprep.subr.mxu0 0.0
    %589 = vmatpush2.msra.mxu0 0.0
    %590 = vmatprep.subr.mxu0 0.0
    %591 = vmatpush2.msra.mxu0 0.0
    %592 = vmatprep.subr.mxu0 0.0
    %593 = vmatpush2.msra.mxu0 0.0
    %594 = vmatprep.mubr.f32.mxu0 0.0
    %595 = vmatmul.mubr.f32.gmra.mxu0 %v397
    %v596 = vpop.f32.mrf.mxu0
    %v597 = vadd.f32 0.0, %v596
    %v598 = vpop.f32.mrf.mxu0
    %599 = vdwg.mxu0
    %v601 = vlaneseq
    %v602 = vshrl.u32 %v601, 7
    %v603 = vsub.s32 0, %v602
    %v604 = vrot.slane %v513, %v603
    %v606 = vadd.f32 %v604, %v597
    %v607 = vld [vmem:[%s25] sm:$0xf]
    %v608 = vld [vmem:[%s25 + $0x4] sm:$0xf]
    %v609 = vld [vmem:[%s25 + $0x8] sm:$0xf]
    %v610 = vld [vmem:[%s25 + $0xc] sm:$0xf]
    %v611 = vld [vmem:[%s25 + $0x10] sm:$0xf]
    %v612 = vld [vmem:[%s25 + $0x14] sm:$0xf]
    %v613 = vld [vmem:[%s25 + $0x18] sm:$0xf]
    %v614 = vld [vmem:[%s25 + $0x1c] sm:$0xf]
    %v615 = vld [vmem:[%s25 + $0x20] sm:$0xf]
    %v616 = vld [vmem:[%s25 + $0x24] sm:$0xf]
    %v617 = vld [vmem:[%s25 + $0x28] sm:$0xf]
    %v618 = vld [vmem:[%s25 + $0x2c] sm:$0xf]
    %v619 = vld [vmem:[%s25 + $0x30] sm:$0xf]
    %v620 = vld [vmem:[%s25 + $0x34] sm:$0xf]
    %v621 = vld [vmem:[%s25 + $0x38] sm:$0xf]
    %v622 = vld [vmem:[%s25 + $0x3c] sm:$0xf]
    %v623 = vunpack.c.l.bf16 %v607
    %v624 = vunpack.c.l.bf16 %v608
    %v625 = vunpack.c.l.bf16 %v609
    %v626 = vunpack.c.l.bf16 %v610
    %v627 = vunpack.c.l.bf16 %v611
    %v628 = vunpack.c.l.bf16 %v612
    %v629 = vunpack.c.l.bf16 %v613
    %v630 = vunpack.c.l.bf16 %v614
    %v631 = vunpack.c.l.bf16 %v615
    %v632 = vunpack.c.l.bf16 %v616
    %v633 = vunpack.c.l.bf16 %v617
    %v634 = vunpack.c.l.bf16 %v618
    %v635 = vunpack.c.l.bf16 %v619
    %v636 = vunpack.c.l.bf16 %v620
    %v637 = vunpack.c.l.bf16 %v621
    %v638 = vunpack.c.l.bf16 %v622
    %639 = vmatprep.subr.mxu0 0.0
    %640 = vmatpush1.msra.mxu0 %v638
    %641 = vmatprep.subr.mxu0 0.0
    %642 = vmatpush1.msra.mxu0 %v637
    %643 = vmatprep.subr.mxu0 0.0
    %644 = vmatpush1.msra.mxu0 %v636
    %645 = vmatprep.subr.mxu0 0.0
    %646 = vmatpush1.msra.mxu0 %v635
    %647 = vmatprep.subr.mxu0 0.0
    %648 = vmatpush1.msra.mxu0 %v634
    %649 = vmatprep.subr.mxu0 0.0
    %650 = vmatpush1.msra.mxu0 %v633
    %651 = vmatprep.subr.mxu0 0.0
    %652 = vmatpush1.msra.mxu0 %v632
    %653 = vmatprep.subr.mxu0 0.0
    %654 = vmatpush1.msra.mxu0 %v631
    %655 = vmatprep.subr.mxu0 0.0
    %656 = vmatpush1.msra.mxu0 %v630
    %657 = vmatprep.subr.mxu0 0.0
    %658 = vmatpush1.msra.mxu0 %v629
    %659 = vmatprep.subr.mxu0 0.0
    %660 = vmatpush1.msra.mxu0 %v628
    %661 = vmatprep.subr.mxu0 0.0
    %662 = vmatpush1.msra.mxu0 %v627
    %663 = vmatprep.subr.mxu0 0.0
    %664 = vmatpush1.msra.mxu0 %v626
    %665 = vmatprep.subr.mxu0 0.0
    %666 = vmatpush1.msra.mxu0 %v625
    %667 = vmatprep.subr.mxu0 0.0
    %668 = vmatpush1.msra.mxu0 %v624
    %669 = vmatprep.subr.mxu0 0.0
    %670 = vmatpush1.msra.mxu0 %v623
    %671 = vmatprep.subr.mxu0 0.0
    %672 = vmatpush2.msra.mxu0 0.0
    %673 = vmatprep.subr.mxu0 0.0
    %674 = vmatpush2.msra.mxu0 0.0
    %675 = vmatprep.subr.mxu0 0.0
    %676 = vmatpush2.msra.mxu0 0.0
    %677 = vmatprep.subr.mxu0 0.0
    %678 = vmatpush2.msra.mxu0 0.0
    %679 = vmatprep.subr.mxu0 0.0
    %680 = vmatpush2.msra.mxu0 0.0
    %681 = vmatprep.subr.mxu0 0.0
    %682 = vmatpush2.msra.mxu0 0.0
    %683 = vmatprep.subr.mxu0 0.0
    %684 = vmatpush2.msra.mxu0 0.0
    %685 = vmatprep.subr.mxu0 0.0
    %686 = vmatpush2.msra.mxu0 0.0
    %687 = vmatprep.subr.mxu0 0.0
    %688 = vmatpush2.msra.mxu0 0.0
    %689 = vmatprep.subr.mxu0 0.0
    %690 = vmatpush2.msra.mxu0 0.0
    %691 = vmatprep.subr.mxu0 0.0
    %692 = vmatpush2.msra.mxu0 0.0
    %693 = vmatprep.subr.mxu0 0.0
    %694 = vmatpush2.msra.mxu0 0.0
    %695 = vmatprep.subr.mxu0 0.0
    %696 = vmatpush2.msra.mxu0 0.0
    %697 = vmatprep.subr.mxu0 0.0
    %698 = vmatpush2.msra.mxu0 0.0
    %699 = vmatprep.subr.mxu0 0.0
    %700 = vmatpush2.msra.mxu0 0.0
    %701 = vmatprep.subr.mxu0 0.0
    %702 = vmatpush2.msra.mxu0 0.0
    %703 = vmatprep.mubr.f32.mxu0 0.0
    %704 = vmatmul.mubr.f32.gmra.mxu0 %v512
    %v705 = vpop.f32.mrf.mxu0
    %v706 = vadd.f32 0.0, %v705
    %v707 = vpop.f32.mrf.mxu0
    %708 = vdwg.mxu0
    %v709 = vadd.f32 %v606, %v706
    %v710 = vmax.f32 %v709, 0.0
    %v711 = vrot.slane %v710, 4
    %v712 = vadd.f32 %v710, %v711
    %v713 = vrot.slane %v712, 2
    %v714 = vadd.f32 %v712, %v713
    %v715 = vrot.slane %v714, 1
    %v716 = vadd.f32 %v714, %v715
    %v717 = vmul.f32 %v716, %v483
    %v718 = vsub.f32 %v710, %v717
    %v719 = vmul.f32 %v718, %v718
    %v720 = vrot.slane %v719, 4
    %v721 = vadd.f32 %v719, %v720
    %v722 = vrot.slane %v721, 2
    %v723 = vadd.f32 %v721, %v722
    %v724 = vrot.slane %v723, 1
    %v725 = vadd.f32 %v723, %v724
    %v726 = vmul.f32 %v725, %v483
    %v727 = vadd.f32 %v726, 1e-05
    %v728 = vrsqrt.pop %v727
    %v729 = vmul.f32 %v718, %v728
    %v730 = vld [vmem:[%s29] sm:$0x1]
    %v732 = vlaneseq
    %v733 = vshrl.u32 %v732, 7
    %v734 = vsub.s32 0, %v733
    %v735 = vrot.slane %v730, %v734
    %v737 = vmul.f32 %v729, %v735
    %v738 = vld [vmem:[%s31] sm:$0x1]
    %v740 = vlaneseq
    %v741 = vshrl.u32 %v740, 7
    %v742 = vsub.s32 0, %v741
    %v743 = vrot.slane %v738, %v742
    %v745 = vadd.f32 %v737, %v743
    %v746 = vld [vmem:[%s39] sm:$0x1]
    %v747 = vld [vmem:[%s33] sm:$0xf]
    %v748 = vld [vmem:[%s33 + $0x4] sm:$0xf]
    %v749 = vld [vmem:[%s33 + $0x8] sm:$0xf]
    %v750 = vld [vmem:[%s33 + $0xc] sm:$0xf]
    %v751 = vld [vmem:[%s33 + $0x10] sm:$0xf]
    %v752 = vld [vmem:[%s33 + $0x14] sm:$0xf]
    %v753 = vld [vmem:[%s33 + $0x18] sm:$0xf]
    %v754 = vld [vmem:[%s33 + $0x1c] sm:$0xf]
    %v755 = vunpack.c.l.bf16 %v747
    %v756 = vunpack.c.l.bf16 %v748
    %v757 = vunpack.c.l.bf16 %v749
    %v758 = vunpack.c.l.bf16 %v750
    %v759 = vunpack.c.l.bf16 %v751
    %v760 = vunpack.c.l.bf16 %v752
    %v761 = vunpack.c.l.bf16 %v753
    %v762 = vunpack.c.l.bf16 %v754
    %763 = vmatprep.subr.mxu0 0.0
    %764 = vmatpush1.msra.mxu0 0.0
    %765 = vmatprep.subr.mxu0 0.0
    %766 = vmatpush1.msra.mxu0 0.0
    %767 = vmatprep.subr.mxu0 0.0
    %768 = vmatpush1.msra.mxu0 0.0
    %769 = vmatprep.subr.mxu0 0.0
    %770 = vmatpush1.msra.mxu0 0.0
    %771 = vmatprep.subr.mxu0 0.0
    %772 = vmatpush1.msra.mxu0 0.0
    %773 = vmatprep.subr.mxu0 0.0
    %774 = vmatpush1.msra.mxu0 0.0
    %775 = vmatprep.subr.mxu0 0.0
    %776 = vmatpush1.msra.mxu0 0.0
    %777 = vmatprep.subr.mxu0 0.0
    %778 = vmatpush1.msra.mxu0 0.0
    %779 = vmatprep.subr.mxu0 0.0
    %780 = vmatpush1.msra.mxu0 %v762
    %781 = vmatprep.subr.mxu0 0.0
    %782 = vmatpush1.msra.mxu0 %v761
    %783 = vmatprep.subr.mxu0 0.0
    %784 = vmatpush1.msra.mxu0 %v760
    %785 = vmatprep.subr.mxu0 0.0
    %786 = vmatpush1.msra.mxu0 %v759
    %787 = vmatprep.subr.mxu0 0.0
    %788 = vmatpush1.msra.mxu0 %v758
    %789 = vmatprep.subr.mxu0 0.0
    %790 = vmatpush1.msra.mxu0 %v757
    %791 = vmatprep.subr.mxu0 0.0
    %792 = vmatpush1.msra.mxu0 %v756
    %793 = vmatprep.subr.mxu0 0.0
    %794 = vmatpush1.msra.mxu0 %v755
    %795 = vmatprep.subr.mxu0 0.0
    %796 = vmatpush2.msra.mxu0 0.0
    %797 = vmatprep.subr.mxu0 0.0
    %798 = vmatpush2.msra.mxu0 0.0
    %799 = vmatprep.subr.mxu0 0.0
    %800 = vmatpush2.msra.mxu0 0.0
    %801 = vmatprep.subr.mxu0 0.0
    %802 = vmatpush2.msra.mxu0 0.0
    %803 = vmatprep.subr.mxu0 0.0
    %804 = vmatpush2.msra.mxu0 0.0
    %805 = vmatprep.subr.mxu0 0.0
    %806 = vmatpush2.msra.mxu0 0.0
    %807 = vmatprep.subr.mxu0 0.0
    %808 = vmatpush2.msra.mxu0 0.0
    %809 = vmatprep.subr.mxu0 0.0
    %810 = vmatpush2.msra.mxu0 0.0
    %811 = vmatprep.subr.mxu0 0.0
    %812 = vmatpush2.msra.mxu0 0.0
    %813 = vmatprep.subr.mxu0 0.0
    %814 = vmatpush2.msra.mxu0 0.0
    %815 = vmatprep.subr.mxu0 0.0
    %816 = vmatpush2.msra.mxu0 0.0
    %817 = vmatprep.subr.mxu0 0.0
    %818 = vmatpush2.msra.mxu0 0.0
    %819 = vmatprep.subr.mxu0 0.0
    %820 = vmatpush2.msra.mxu0 0.0
    %821 = vmatprep.subr.mxu0 0.0
    %822 = vmatpush2.msra.mxu0 0.0
    %823 = vmatprep.subr.mxu0 0.0
    %824 = vmatpush2.msra.mxu0 0.0
    %825 = vmatprep.subr.mxu0 0.0
    %826 = vmatpush2.msra.mxu0 0.0
    %827 = vmatprep.mubr.f32.mxu0 0.0
    %828 = vmatmul.mubr.f32.gmra.mxu0 %v397
    %v829 = vpop.f32.mrf.mxu0
    %v830 = vadd.f32 0.0, %v829
    %v831 = vpop.f32.mrf.mxu0
    %832 = vdwg.mxu0
    %v834 = vlaneseq
    %v835 = vshrl.u32 %v834, 7
    %v836 = vsub.s32 0, %v835
    %v837 = vrot.slane %v746, %v836
    %v839 = vadd.f32 %v837, %v830
    %v840 = vld [vmem:[%s35] sm:$0xf]
    %v841 = vld [vmem:[%s35 + $0x4] sm:$0xf]
    %v842 = vld [vmem:[%s35 + $0x8] sm:$0xf]
    %v843 = vld [vmem:[%s35 + $0xc] sm:$0xf]
    %v844 = vld [vmem:[%s35 + $0x10] sm:$0xf]
    %v845 = vld [vmem:[%s35 + $0x14] sm:$0xf]
    %v846 = vld [vmem:[%s35 + $0x18] sm:$0xf]
    %v847 = vld [vmem:[%s35 + $0x1c] sm:$0xf]
    %v848 = vld [vmem:[%s35 + $0x20] sm:$0xf]
    %v849 = vld [vmem:[%s35 + $0x24] sm:$0xf]
    %v850 = vld [vmem:[%s35 + $0x28] sm:$0xf]
    %v851 = vld [vmem:[%s35 + $0x2c] sm:$0xf]
    %v852 = vld [vmem:[%s35 + $0x30] sm:$0xf]
    %v853 = vld [vmem:[%s35 + $0x34] sm:$0xf]
    %v854 = vld [vmem:[%s35 + $0x38] sm:$0xf]
    %v855 = vld [vmem:[%s35 + $0x3c] sm:$0xf]
    %v856 = vunpack.c.l.bf16 %v840
    %v857 = vunpack.c.l.bf16 %v841
    %v858 = vunpack.c.l.bf16 %v842
    %v859 = vunpack.c.l.bf16 %v843
    %v860 = vunpack.c.l.bf16 %v844
    %v861 = vunpack.c.l.bf16 %v845
    %v862 = vunpack.c.l.bf16 %v846
    %v863 = vunpack.c.l.bf16 %v847
    %v864 = vunpack.c.l.bf16 %v848
    %v865 = vunpack.c.l.bf16 %v849
    %v866 = vunpack.c.l.bf16 %v850
    %v867 = vunpack.c.l.bf16 %v851
    %v868 = vunpack.c.l.bf16 %v852
    %v869 = vunpack.c.l.bf16 %v853
    %v870 = vunpack.c.l.bf16 %v854
    %v871 = vunpack.c.l.bf16 %v855
    %872 = vmatprep.subr.mxu0 0.0
    %873 = vmatpush1.msra.mxu0 %v871
    %874 = vmatprep.subr.mxu0 0.0
    %875 = vmatpush1.msra.mxu0 %v870
    %876 = vmatprep.subr.mxu0 0.0
    %877 = vmatpush1.msra.mxu0 %v869
    %878 = vmatprep.subr.mxu0 0.0
    %879 = vmatpush1.msra.mxu0 %v868
    %880 = vmatprep.subr.mxu0 0.0
    %881 = vmatpush1.msra.mxu0 %v867
    %882 = vmatprep.subr.mxu0 0.0
    %883 = vmatpush1.msra.mxu0 %v866
    %884 = vmatprep.subr.mxu0 0.0
    %885 = vmatpush1.msra.mxu0 %v865
    %886 = vmatprep.subr.mxu0 0.0
    %887 = vmatpush1.msra.mxu0 %v864
    %888 = vmatprep.subr.mxu0 0.0
    %889 = vmatpush1.msra.mxu0 %v863
    %890 = vmatprep.subr.mxu0 0.0
    %891 = vmatpush1.msra.mxu0 %v862
    %892 = vmatprep.subr.mxu0 0.0
    %893 = vmatpush1.msra.mxu0 %v861
    %894 = vmatprep.subr.mxu0 0.0
    %895 = vmatpush1.msra.mxu0 %v860
    %896 = vmatprep.subr.mxu0 0.0
    %897 = vmatpush1.msra.mxu0 %v859
    %898 = vmatprep.subr.mxu0 0.0
    %899 = vmatpush1.msra.mxu0 %v858
    %900 = vmatprep.subr.mxu0 0.0
    %901 = vmatpush1.msra.mxu0 %v857
    %902 = vmatprep.subr.mxu0 0.0
    %903 = vmatpush1.msra.mxu0 %v856
    %904 = vmatprep.subr.mxu0 0.0
    %905 = vmatpush2.msra.mxu0 0.0
    %906 = vmatprep.subr.mxu0 0.0
    %907 = vmatpush2.msra.mxu0 0.0
    %908 = vmatprep.subr.mxu0 0.0
    %909 = vmatpush2.msra.mxu0 0.0
    %910 = vmatprep.subr.mxu0 0.0
    %911 = vmatpush2.msra.mxu0 0.0
    %912 = vmatprep.subr.mxu0 0.0
    %913 = vmatpush2.msra.mxu0 0.0
    %914 = vmatprep.subr.mxu0 0.0
    %915 = vmatpush2.msra.mxu0 0.0
    %916 = vmatprep.subr.mxu0 0.0
    %917 = vmatpush2.msra.mxu0 0.0
    %918 = vmatprep.subr.mxu0 0.0
    %919 = vmatpush2.msra.mxu0 0.0
    %920 = vmatprep.subr.mxu0 0.0
    %921 = vmatpush2.msra.mxu0 0.0
    %922 = vmatprep.subr.mxu0 0.0
    %923 = vmatpush2.msra.mxu0 0.0
    %924 = vmatprep.subr.mxu0 0.0
    %925 = vmatpush2.msra.mxu0 0.0
    %926 = vmatprep.subr.mxu0 0.0
    %927 = vmatpush2.msra.mxu0 0.0
    %928 = vmatprep.subr.mxu0 0.0
    %929 = vmatpush2.msra.mxu0 0.0
    %930 = vmatprep.subr.mxu0 0.0
    %931 = vmatpush2.msra.mxu0 0.0
    %932 = vmatprep.subr.mxu0 0.0
    %933 = vmatpush2.msra.mxu0 0.0
    %934 = vmatprep.subr.mxu0 0.0
    %935 = vmatpush2.msra.mxu0 0.0
    %936 = vmatprep.mubr.f32.mxu0 0.0
    %937 = vmatmul.mubr.f32.gmra.mxu0 %v512
    %v938 = vpop.f32.mrf.mxu0
    %v939 = vadd.f32 0.0, %v938
    %v940 = vpop.f32.mrf.mxu0
    %941 = vdwg.mxu0
    %v942 = vadd.f32 %v839, %v939
    %v943 = vld [vmem:[%s37] sm:$0xf]
    %v944 = vld [vmem:[%s37 + $0x4] sm:$0xf]
    %v945 = vld [vmem:[%s37 + $0x8] sm:$0xf]
    %v946 = vld [vmem:[%s37 + $0xc] sm:$0xf]
    %v947 = vld [vmem:[%s37 + $0x10] sm:$0xf]
    %v948 = vld [vmem:[%s37 + $0x14] sm:$0xf]
    %v949 = vld [vmem:[%s37 + $0x18] sm:$0xf]
    %v950 = vld [vmem:[%s37 + $0x1c] sm:$0xf]
    %v951 = vld [vmem:[%s37 + $0x20] sm:$0xf]
    %v952 = vld [vmem:[%s37 + $0x24] sm:$0xf]
    %v953 = vld [vmem:[%s37 + $0x28] sm:$0xf]
    %v954 = vld [vmem:[%s37 + $0x2c] sm:$0xf]
    %v955 = vld [vmem:[%s37 + $0x30] sm:$0xf]
    %v956 = vld [vmem:[%s37 + $0x34] sm:$0xf]
    %v957 = vld [vmem:[%s37 + $0x38] sm:$0xf]
    %v958 = vld [vmem:[%s37 + $0x3c] sm:$0xf]
    %v959 = vunpack.c.l.bf16 %v943
    %v960 = vunpack.c.l.bf16 %v944
    %v961 = vunpack.c.l.bf16 %v945
    %v962 = vunpack.c.l.bf16 %v946
    %v963 = vunpack.c.l.bf16 %v947
    %v964 = vunpack.c.l.bf16 %v948
    %v965 = vunpack.c.l.bf16 %v949
    %v966 = vunpack.c.l.bf16 %v950
    %v967 = vunpack.c.l.bf16 %v951
    %v968 = vunpack.c.l.bf16 %v952
    %v969 = vunpack.c.l.bf16 %v953
    %v970 = vunpack.c.l.bf16 %v954
    %v971 = vunpack.c.l.bf16 %v955
    %v972 = vunpack.c.l.bf16 %v956
    %v973 = vunpack.c.l.bf16 %v957
    %v974 = vunpack.c.l.bf16 %v958
    %975 = vmatprep.subr.mxu0 0.0
    %976 = vmatpush1.msra.mxu0 %v974
    %977 = vmatprep.subr.mxu0 0.0
    %978 = vmatpush1.msra.mxu0 %v973
    %979 = vmatprep.subr.mxu0 0.0
    %980 = vmatpush1.msra.mxu0 %v972
    %981 = vmatprep.subr.mxu0 0.0
    %982 = vmatpush1.msra.mxu0 %v971
    %983 = vmatprep.subr.mxu0 0.0
    %984 = vmatpush1.msra.mxu0 %v970
    %985 = vmatprep.subr.mxu0 0.0
    %986 = vmatpush1.msra.mxu0 %v969
    %987 = vmatprep.subr.mxu0 0.0
    %988 = vmatpush1.msra.mxu0 %v968
    %989 = vmatprep.subr.mxu0 0.0
    %990 = vmatpush1.msra.mxu0 %v967
    %991 = vmatprep.subr.mxu0 0.0
    %992 = vmatpush1.msra.mxu0 %v966
    %993 = vmatprep.subr.mxu0 0.0
    %994 = vmatpush1.msra.mxu0 %v965
    %995 = vmatprep.subr.mxu0 0.0
    %996 = vmatpush1.msra.mxu0 %v964
    %997 = vmatprep.subr.mxu0 0.0
    %998 = vmatpush1.msra.mxu0 %v963
    %999 = vmatprep.subr.mxu0 0.0
    %1000 = vmatpush1.msra.mxu0 %v962
    %1001 = vmatprep.subr.mxu0 0.0
    %1002 = vmatpush1.msra.mxu0 %v961
    %1003 = vmatprep.subr.mxu0 0.0
    %1004 = vmatpush1.msra.mxu0 %v960
    %1005 = vmatprep.subr.mxu0 0.0
    %1006 = vmatpush1.msra.mxu0 %v959
    %1007 = vmatprep.subr.mxu0 0.0
    %1008 = vmatpush2.msra.mxu0 0.0
    %1009 = vmatprep.subr.mxu0 0.0
    %1010 = vmatpush2.msra.mxu0 0.0
    %1011 = vmatprep.subr.mxu0 0.0
    %1012 = vmatpush2.msra.mxu0 0.0
    %1013 = vmatprep.subr.mxu0 0.0
    %1014 = vmatpush2.msra.mxu0 0.0
    %1015 = vmatprep.subr.mxu0 0.0
    %1016 = vmatpush2.msra.mxu0 0.0
    %1017 = vmatprep.subr.mxu0 0.0
    %1018 = vmatpush2.msra.mxu0 0.0
    %1019 = vmatprep.subr.mxu0 0.0
    %1020 = vmatpush2.msra.mxu0 0.0
    %1021 = vmatprep.subr.mxu0 0.0
    %1022 = vmatpush2.msra.mxu0 0.0
    %1023 = vmatprep.subr.mxu0 0.0
    %1024 = vmatpush2.msra.mxu0 0.0
    %1025 = vmatprep.subr.mxu0 0.0
    %1026 = vmatpush2.msra.mxu0 0.0
    %1027 = vmatprep.subr.mxu0 0.0
    %1028 = vmatpush2.msra.mxu0 0.0
    %1029 = vmatprep.subr.mxu0 0.0
    %1030 = vmatpush2.msra.mxu0 0.0
    %1031 = vmatprep.subr.mxu0 0.0
    %1032 = vmatpush2.msra.mxu0 0.0
    %1033 = vmatprep.subr.mxu0 0.0
    %1034 = vmatpush2.msra.mxu0 0.0
    %1035 = vmatprep.subr.mxu0 0.0
    %1036 = vmatpush2.msra.mxu0 0.0
    %1037 = vmatprep.subr.mxu0 0.0
    %1038 = vmatpush2.msra.mxu0 0.0
    %1039 = vmatprep.mubr.f32.mxu0 0.0
    %1040 = vmatmul.mubr.f32.gmra.mxu0 %v745
    %v1041 = vpop.f32.mrf.mxu0
    %v1042 = vadd.f32 0.0, %v1041
    %v1043 = vpop.f32.mrf.mxu0
    %1044 = vdwg.mxu0
    %v1045 = vadd.f32 %v942, %v1042
    %v1046 = vmax.f32 %v1045, 0.0
    %v1047 = vrot.slane %v1046, 4
    %v1048 = vadd.f32 %v1046, %v1047
    %v1049 = vrot.slane %v1048, 2
    %v1050 = vadd.f32 %v1048, %v1049
    %v1051 = vrot.slane %v1050, 1
    %v1052 = vadd.f32 %v1050, %v1051
    %v1053 = vmul.f32 %v1052, %v483
    %v1054 = vsub.f32 %v1046, %v1053
    %v1055 = vmul.f32 %v1054, %v1054
    %v1056 = vrot.slane %v1055, 4
    %v1057 = vadd.f32 %v1055, %v1056
    %v1058 = vrot.slane %v1057, 2
    %v1059 = vadd.f32 %v1057, %v1058
    %v1060 = vrot.slane %v1059, 1
    %v1061 = vadd.f32 %v1059, %v1060
    %v1062 = vmul.f32 %v1061, %v483
    %v1063 = vadd.f32 %v1062, 1e-05
    %v1064 = vrsqrt.pop %v1063
    %v1065 = vmul.f32 %v1054, %v1064
    %v1066 = vld [vmem:[%s41] sm:$0x1]
    %v1068 = vlaneseq
    %v1069 = vshrl.u32 %v1068, 7
    %v1070 = vsub.s32 0, %v1069
    %v1071 = vrot.slane %v1066, %v1070
    %v1073 = vmul.f32 %v1065, %v1071
    %v1074 = vld [vmem:[%s43] sm:$0x1]
    %v1076 = vlaneseq
    %v1077 = vshrl.u32 %v1076, 7
    %v1078 = vsub.s32 0, %v1077
    %v1079 = vrot.slane %v1074, %v1078
    %v1081 = vadd.f32 %v1073, %v1079
    %v1082 = vld [vmem:[%s53] sm:$0x1]
    %v1083 = vld [vmem:[%s45] sm:$0xf]
    %v1084 = vld [vmem:[%s45 + $0x4] sm:$0xf]
    %v1085 = vld [vmem:[%s45 + $0x8] sm:$0xf]
    %v1086 = vld [vmem:[%s45 + $0xc] sm:$0xf]
    %v1087 = vld [vmem:[%s45 + $0x10] sm:$0xf]
    %v1088 = vld [vmem:[%s45 + $0x14] sm:$0xf]
    %v1089 = vld [vmem:[%s45 + $0x18] sm:$0xf]
    %v1090 = vld [vmem:[%s45 + $0x1c] sm:$0xf]
    %v1091 = vunpack.c.l.bf16 %v1083
    %v1092 = vunpack.c.l.bf16 %v1084
    %v1093 = vunpack.c.l.bf16 %v1085
    %v1094 = vunpack.c.l.bf16 %v1086
    %v1095 = vunpack.c.l.bf16 %v1087
    %v1096 = vunpack.c.l.bf16 %v1088
    %v1097 = vunpack.c.l.bf16 %v1089
    %v1098 = vunpack.c.l.bf16 %v1090
    %1099 = vmatprep.subr.mxu0 0.0
    %1100 = vmatpush1.msra.mxu0 0.0
    %1101 = vmatprep.subr.mxu0 0.0
    %1102 = vmatpush1.msra.mxu0 0.0
    %1103 = vmatprep.subr.mxu0 0.0
    %1104 = vmatpush1.msra.mxu0 0.0
    %1105 = vmatprep.subr.mxu0 0.0
    %1106 = vmatpush1.msra.mxu0 0.0
    %1107 = vmatprep.subr.mxu0 0.0
    %1108 = vmatpush1.msra.mxu0 0.0
    %1109 = vmatprep.subr.mxu0 0.0
    %1110 = vmatpush1.msra.mxu0 0.0
    %1111 = vmatprep.subr.mxu0 0.0
    %1112 = vmatpush1.msra.mxu0 0.0
    %1113 = vmatprep.subr.mxu0 0.0
    %1114 = vmatpush1.msra.mxu0 0.0
    %1115 = vmatprep.subr.mxu0 0.0
    %1116 = vmatpush1.msra.mxu0 %v1098
    %1117 = vmatprep.subr.mxu0 0.0
    %1118 = vmatpush1.msra.mxu0 %v1097
    %1119 = vmatprep.subr.mxu0 0.0
    %1120 = vmatpush1.msra.mxu0 %v1096
    %1121 = vmatprep.subr.mxu0 0.0
    %1122 = vmatpush1.msra.mxu0 %v1095
    %1123 = vmatprep.subr.mxu0 0.0
    %1124 = vmatpush1.msra.mxu0 %v1094
    %1125 = vmatprep.subr.mxu0 0.0
    %1126 = vmatpush1.msra.mxu0 %v1093
    %1127 = vmatprep.subr.mxu0 0.0
    %1128 = vmatpush1.msra.mxu0 %v1092
    %1129 = vmatprep.subr.mxu0 0.0
    %1130 = vmatpush1.msra.mxu0 %v1091
    %1131 = vmatprep.subr.mxu0 0.0
    %1132 = vmatpush2.msra.mxu0 0.0
    %1133 = vmatprep.subr.mxu0 0.0
    %1134 = vmatpush2.msra.mxu0 0.0
    %1135 = vmatprep.subr.mxu0 0.0
    %1136 = vmatpush2.msra.mxu0 0.0
    %1137 = vmatprep.subr.mxu0 0.0
    %1138 = vmatpush2.msra.mxu0 0.0
    %1139 = vmatprep.subr.mxu0 0.0
    %1140 = vmatpush2.msra.mxu0 0.0
    %1141 = vmatprep.subr.mxu0 0.0
    %1142 = vmatpush2.msra.mxu0 0.0
    %1143 = vmatprep.subr.mxu0 0.0
    %1144 = vmatpush2.msra.mxu0 0.0
    %1145 = vmatprep.subr.mxu0 0.0
    %1146 = vmatpush2.msra.mxu0 0.0
    %1147 = vmatprep.subr.mxu0 0.0
    %1148 = vmatpush2.msra.mxu0 0.0
    %1149 = vmatprep.subr.mxu0 0.0
    %1150 = vmatpush2.msra.mxu0 0.0
    %1151 = vmatprep.subr.mxu0 0.0
    %1152 = vmatpush2.msra.mxu0 0.0
    %1153 = vmatprep.subr.mxu0 0.0
    %1154 = vmatpush2.msra.mxu0 0.0
    %1155 = vmatprep.subr.mxu0 0.0
    %1156 = vmatpush2.msra.mxu0 0.0
    %1157 = vmatprep.subr.mxu0 0.0
    %1158 = vmatpush2.msra.mxu0 0.0
    %1159 = vmatprep.subr.mxu0 0.0
    %1160 = vmatpush2.msra.mxu0 0.0
    %1161 = vmatprep.subr.mxu0 0.0
    %1162 = vmatpush2.msra.mxu0 0.0
    %1163 = vmatprep.mubr.f32.mxu0 0.0
    %1164 = vmatmul.mubr.f32.gmra.mxu0 %v397
    %v1165 = vpop.f32.mrf.mxu0
    %v1166 = vadd.f32 0.0, %v1165
    %v1167 = vpop.f32.mrf.mxu0
    %1168 = vdwg.mxu0
    %v1170 = vlaneseq
    %v1171 = vshrl.u32 %v1170, 7
    %v1172 = vsub.s32 0, %v1171
    %v1173 = vrot.slane %v1082, %v1172
    %v1175 = vadd.f32 %v1173, %v1166
    %v1176 = vld [vmem:[%s47] sm:$0xf]
    %v1177 = vld [vmem:[%s47 + $0x4] sm:$0xf]
    %v1178 = vld [vmem:[%s47 + $0x8] sm:$0xf]
    %v1179 = vld [vmem:[%s47 + $0xc] sm:$0xf]
    %v1180 = vld [vmem:[%s47 + $0x10] sm:$0xf]
    %v1181 = vld [vmem:[%s47 + $0x14] sm:$0xf]
    %v1182 = vld [vmem:[%s47 + $0x18] sm:$0xf]
    %v1183 = vld [vmem:[%s47 + $0x1c] sm:$0xf]
    %v1184 = vld [vmem:[%s47 + $0x20] sm:$0xf]
    %v1185 = vld [vmem:[%s47 + $0x24] sm:$0xf]
    %v1186 = vld [vmem:[%s47 + $0x28] sm:$0xf]
    %v1187 = vld [vmem:[%s47 + $0x2c] sm:$0xf]
    %v1188 = vld [vmem:[%s47 + $0x30] sm:$0xf]
    %v1189 = vld [vmem:[%s47 + $0x34] sm:$0xf]
    %v1190 = vld [vmem:[%s47 + $0x38] sm:$0xf]
    %v1191 = vld [vmem:[%s47 + $0x3c] sm:$0xf]
    %v1192 = vunpack.c.l.bf16 %v1176
    %v1193 = vunpack.c.l.bf16 %v1177
    %v1194 = vunpack.c.l.bf16 %v1178
    %v1195 = vunpack.c.l.bf16 %v1179
    %v1196 = vunpack.c.l.bf16 %v1180
    %v1197 = vunpack.c.l.bf16 %v1181
    %v1198 = vunpack.c.l.bf16 %v1182
    %v1199 = vunpack.c.l.bf16 %v1183
    %v1200 = vunpack.c.l.bf16 %v1184
    %v1201 = vunpack.c.l.bf16 %v1185
    %v1202 = vunpack.c.l.bf16 %v1186
    %v1203 = vunpack.c.l.bf16 %v1187
    %v1204 = vunpack.c.l.bf16 %v1188
    %v1205 = vunpack.c.l.bf16 %v1189
    %v1206 = vunpack.c.l.bf16 %v1190
    %v1207 = vunpack.c.l.bf16 %v1191
    %1208 = vmatprep.subr.mxu0 0.0
    %1209 = vmatpush1.msra.mxu0 %v1207
    %1210 = vmatprep.subr.mxu0 0.0
    %1211 = vmatpush1.msra.mxu0 %v1206
    %1212 = vmatprep.subr.mxu0 0.0
    %1213 = vmatpush1.msra.mxu0 %v1205
    %1214 = vmatprep.subr.mxu0 0.0
    %1215 = vmatpush1.msra.mxu0 %v1204
    %1216 = vmatprep.subr.mxu0 0.0
    %1217 = vmatpush1.msra.mxu0 %v1203
    %1218 = vmatprep.subr.mxu0 0.0
    %1219 = vmatpush1.msra.mxu0 %v1202
    %1220 = vmatprep.subr.mxu0 0.0
    %1221 = vmatpush1.msra.mxu0 %v1201
    %1222 = vmatprep.subr.mxu0 0.0
    %1223 = vmatpush1.msra.mxu0 %v1200
    %1224 = vmatprep.subr.mxu0 0.0
    %1225 = vmatpush1.msra.mxu0 %v1199
    %1226 = vmatprep.subr.mxu0 0.0
    %1227 = vmatpush1.msra.mxu0 %v1198
    %1228 = vmatprep.subr.mxu0 0.0
    %1229 = vmatpush1.msra.mxu0 %v1197
    %1230 = vmatprep.subr.mxu0 0.0
    %1231 = vmatpush1.msra.mxu0 %v1196
    %1232 = vmatprep.subr.mxu0 0.0
    %1233 = vmatpush1.msra.mxu0 %v1195
    %1234 = vmatprep.subr.mxu0 0.0
    %1235 = vmatpush1.msra.mxu0 %v1194
    %1236 = vmatprep.subr.mxu0 0.0
    %1237 = vmatpush1.msra.mxu0 %v1193
    %1238 = vmatprep.subr.mxu0 0.0
    %1239 = vmatpush1.msra.mxu0 %v1192
    %1240 = vmatprep.subr.mxu0 0.0
    %1241 = vmatpush2.msra.mxu0 0.0
    %1242 = vmatprep.subr.mxu0 0.0
    %1243 = vmatpush2.msra.mxu0 0.0
    %1244 = vmatprep.subr.mxu0 0.0
    %1245 = vmatpush2.msra.mxu0 0.0
    %1246 = vmatprep.subr.mxu0 0.0
    %1247 = vmatpush2.msra.mxu0 0.0
    %1248 = vmatprep.subr.mxu0 0.0
    %1249 = vmatpush2.msra.mxu0 0.0
    %1250 = vmatprep.subr.mxu0 0.0
    %1251 = vmatpush2.msra.mxu0 0.0
    %1252 = vmatprep.subr.mxu0 0.0
    %1253 = vmatpush2.msra.mxu0 0.0
    %1254 = vmatprep.subr.mxu0 0.0
    %1255 = vmatpush2.msra.mxu0 0.0
    %1256 = vmatprep.subr.mxu0 0.0
    %1257 = vmatpush2.msra.mxu0 0.0
    %1258 = vmatprep.subr.mxu0 0.0
    %1259 = vmatpush2.msra.mxu0 0.0
    %1260 = vmatprep.subr.mxu0 0.0
    %1261 = vmatpush2.msra.mxu0 0.0
    %1262 = vmatprep.subr.mxu0 0.0
    %1263 = vmatpush2.msra.mxu0 0.0
    %1264 = vmatprep.subr.mxu0 0.0
    %1265 = vmatpush2.msra.mxu0 0.0
    %1266 = vmatprep.subr.mxu0 0.0
    %1267 = vmatpush2.msra.mxu0 0.0
    %1268 = vmatprep.subr.mxu0 0.0
    %1269 = vmatpush2.msra.mxu0 0.0
    %1270 = vmatprep.subr.mxu0 0.0
    %1271 = vmatpush2.msra.mxu0 0.0
    %1272 = vmatprep.mubr.f32.mxu0 0.0
    %1273 = vmatmul.mubr.f32.gmra.mxu0 %v512
    %v1274 = vpop.f32.mrf.mxu0
    %v1275 = vadd.f32 0.0, %v1274
    %v1276 = vpop.f32.mrf.mxu0
    %1277 = vdwg.mxu0
    %v1278 = vadd.f32 %v1175, %v1275
    %v1279 = vld [vmem:[%s49] sm:$0xf]
    %v1280 = vld [vmem:[%s49 + $0x4] sm:$0xf]
    %v1281 = vld [vmem:[%s49 + $0x8] sm:$0xf]
    %v1282 = vld [vmem:[%s49 + $0xc] sm:$0xf]
    %v1283 = vld [vmem:[%s49 + $0x10] sm:$0xf]
    %v1284 = vld [vmem:[%s49 + $0x14] sm:$0xf]
    %v1285 = vld [vmem:[%s49 + $0x18] sm:$0xf]
    %v1286 = vld [vmem:[%s49 + $0x1c] sm:$0xf]
    %v1287 = vld [vmem:[%s49 + $0x20] sm:$0xf]
    %v1288 = vld [vmem:[%s49 + $0x24] sm:$0xf]
    %v1289 = vld [vmem:[%s49 + $0x28] sm:$0xf]
    %v1290 = vld [vmem:[%s49 + $0x2c] sm:$0xf]
    %v1291 = vld [vmem:[%s49 + $0x30] sm:$0xf]
    %v1292 = vld [vmem:[%s49 + $0x34] sm:$0xf]
    %v1293 = vld [vmem:[%s49 + $0x38] sm:$0xf]
    %v1294 = vld [vmem:[%s49 + $0x3c] sm:$0xf]
    %v1295 = vunpack.c.l.bf16 %v1279
    %v1296 = vunpack.c.l.bf16 %v1280
    %v1297 = vunpack.c.l.bf16 %v1281
    %v1298 = vunpack.c.l.bf16 %v1282
    %v1299 = vunpack.c.l.bf16 %v1283
    %v1300 = vunpack.c.l.bf16 %v1284
    %v1301 = vunpack.c.l.bf16 %v1285
    %v1302 = vunpack.c.l.bf16 %v1286
    %v1303 = vunpack.c.l.bf16 %v1287
    %v1304 = vunpack.c.l.bf16 %v1288
    %v1305 = vunpack.c.l.bf16 %v1289
    %v1306 = vunpack.c.l.bf16 %v1290
    %v1307 = vunpack.c.l.bf16 %v1291
    %v1308 = vunpack.c.l.bf16 %v1292
    %v1309 = vunpack.c.l.bf16 %v1293
    %v1310 = vunpack.c.l.bf16 %v1294
    %1311 = vmatprep.subr.mxu0 0.0
    %1312 = vmatpush1.msra.mxu0 %v1310
    %1313 = vmatprep.subr.mxu0 0.0
    %1314 = vmatpush1.msra.mxu0 %v1309
    %1315 = vmatprep.subr.mxu0 0.0
    %1316 = vmatpush1.msra.mxu0 %v1308
    %1317 = vmatprep.subr.mxu0 0.0
    %1318 = vmatpush1.msra.mxu0 %v1307
    %1319 = vmatprep.subr.mxu0 0.0
    %1320 = vmatpush1.msra.mxu0 %v1306
    %1321 = vmatprep.subr.mxu0 0.0
    %1322 = vmatpush1.msra.mxu0 %v1305
    %1323 = vmatprep.subr.mxu0 0.0
    %1324 = vmatpush1.msra.mxu0 %v1304
    %1325 = vmatprep.subr.mxu0 0.0
    %1326 = vmatpush1.msra.mxu0 %v1303
    %1327 = vmatprep.subr.mxu0 0.0
    %1328 = vmatpush1.msra.mxu0 %v1302
    %1329 = vmatprep.subr.mxu0 0.0
    %1330 = vmatpush1.msra.mxu0 %v1301
    %1331 = vmatprep.subr.mxu0 0.0
    %1332 = vmatpush1.msra.mxu0 %v1300
    %1333 = vmatprep.subr.mxu0 0.0
    %1334 = vmatpush1.msra.mxu0 %v1299
    %1335 = vmatprep.subr.mxu0 0.0
    %1336 = vmatpush1.msra.mxu0 %v1298
    %1337 = vmatprep.subr.mxu0 0.0
    %1338 = vmatpush1.msra.mxu0 %v1297
    %1339 = vmatprep.subr.mxu0 0.0
    %1340 = vmatpush1.msra.mxu0 %v1296
    %1341 = vmatprep.subr.mxu0 0.0
    %1342 = vmatpush1.msra.mxu0 %v1295
    %1343 = vmatprep.subr.mxu0 0.0
    %1344 = vmatpush2.msra.mxu0 0.0
    %1345 = vmatprep.subr.mxu0 0.0
    %1346 = vmatpush2.msra.mxu0 0.0
    %1347 = vmatprep.subr.mxu0 0.0
    %1348 = vmatpush2.msra.mxu0 0.0
    %1349 = vmatprep.subr.mxu0 0.0
    %1350 = vmatpush2.msra.mxu0 0.0
    %1351 = vmatprep.subr.mxu0 0.0
    %1352 = vmatpush2.msra.mxu0 0.0
    %1353 = vmatprep.subr.mxu0 0.0
    %1354 = vmatpush2.msra.mxu0 0.0
    %1355 = vmatprep.subr.mxu0 0.0
    %1356 = vmatpush2.msra.mxu0 0.0
    %1357 = vmatprep.subr.mxu0 0.0
    %1358 = vmatpush2.msra.mxu0 0.0
    %1359 = vmatprep.subr.mxu0 0.0
    %1360 = vmatpush2.msra.mxu0 0.0
    %1361 = vmatprep.subr.mxu0 0.0
    %1362 = vmatpush2.msra.mxu0 0.0
    %1363 = vmatprep.subr.mxu0 0.0
    %1364 = vmatpush2.msra.mxu0 0.0
    %1365 = vmatprep.subr.mxu0 0.0
    %1366 = vmatpush2.msra.mxu0 0.0
    %1367 = vmatprep.subr.mxu0 0.0
    %1368 = vmatpush2.msra.mxu0 0.0
    %1369 = vmatprep.subr.mxu0 0.0
    %1370 = vmatpush2.msra.mxu0 0.0
    %1371 = vmatprep.subr.mxu0 0.0
    %1372 = vmatpush2.msra.mxu0 0.0
    %1373 = vmatprep.subr.mxu0 0.0
    %1374 = vmatpush2.msra.mxu0 0.0
    %1375 = vmatprep.mubr.f32.mxu0 0.0
    %1376 = vmatmul.mubr.f32.gmra.mxu0 %v745
    %v1377 = vpop.f32.mrf.mxu0
    %v1378 = vadd.f32 0.0, %v1377
    %v1379 = vpop.f32.mrf.mxu0
    %1380 = vdwg.mxu0
    %v1381 = vadd.f32 %v1278, %v1378
    %v1382 = vld [vmem:[%s51] sm:$0xf]
    %v1383 = vld [vmem:[%s51 + $0x4] sm:$0xf]
    %v1384 = vld [vmem:[%s51 + $0x8] sm:$0xf]
    %v1385 = vld [vmem:[%s51 + $0xc] sm:$0xf]
    %v1386 = vld [vmem:[%s51 + $0x10] sm:$0xf]
    %v1387 = vld [vmem:[%s51 + $0x14] sm:$0xf]
    %v1388 = vld [vmem:[%s51 + $0x18] sm:$0xf]
    %v1389 = vld [vmem:[%s51 + $0x1c] sm:$0xf]
    %v1390 = vld [vmem:[%s51 + $0x20] sm:$0xf]
    %v1391 = vld [vmem:[%s51 + $0x24] sm:$0xf]
    %v1392 = vld [vmem:[%s51 + $0x28] sm:$0xf]
    %v1393 = vld [vmem:[%s51 + $0x2c] sm:$0xf]
    %v1394 = vld [vmem:[%s51 + $0x30] sm:$0xf]
    %v1395 = vld [vmem:[%s51 + $0x34] sm:$0xf]
    %v1396 = vld [vmem:[%s51 + $0x38] sm:$0xf]
    %v1397 = vld [vmem:[%s51 + $0x3c] sm:$0xf]
    %v1398 = vunpack.c.l.bf16 %v1382
    %v1399 = vunpack.c.l.bf16 %v1383
    %v1400 = vunpack.c.l.bf16 %v1384
    %v1401 = vunpack.c.l.bf16 %v1385
    %v1402 = vunpack.c.l.bf16 %v1386
    %v1403 = vunpack.c.l.bf16 %v1387
    %v1404 = vunpack.c.l.bf16 %v1388
    %v1405 = vunpack.c.l.bf16 %v1389
    %v1406 = vunpack.c.l.bf16 %v1390
    %v1407 = vunpack.c.l.bf16 %v1391
    %v1408 = vunpack.c.l.bf16 %v1392
    %v1409 = vunpack.c.l.bf16 %v1393
    %v1410 = vunpack.c.l.bf16 %v1394
    %v1411 = vunpack.c.l.bf16 %v1395
    %v1412 = vunpack.c.l.bf16 %v1396
    %v1413 = vunpack.c.l.bf16 %v1397
    %1414 = vmatprep.subr.mxu0 0.0
    %1415 = vmatpush1.msra.mxu0 %v1413
    %1416 = vmatprep.subr.mxu0 0.0
    %1417 = vmatpush1.msra.mxu0 %v1412
    %1418 = vmatprep.subr.mxu0 0.0
    %1419 = vmatpush1.msra.mxu0 %v1411
    %1420 = vmatprep.subr.mxu0 0.0
    %1421 = vmatpush1.msra.mxu0 %v1410
    %1422 = vmatprep.subr.mxu0 0.0
    %1423 = vmatpush1.msra.mxu0 %v1409
    %1424 = vmatprep.subr.mxu0 0.0
    %1425 = vmatpush1.msra.mxu0 %v1408
    %1426 = vmatprep.subr.mxu0 0.0
    %1427 = vmatpush1.msra.mxu0 %v1407
    %1428 = vmatprep.subr.mxu0 0.0
    %1429 = vmatpush1.msra.mxu0 %v1406
    %1430 = vmatprep.subr.mxu0 0.0
    %1431 = vmatpush1.msra.mxu0 %v1405
    %1432 = vmatprep.subr.mxu0 0.0
    %1433 = vmatpush1.msra.mxu0 %v1404
    %1434 = vmatprep.subr.mxu0 0.0
    %1435 = vmatpush1.msra.mxu0 %v1403
    %1436 = vmatprep.subr.mxu0 0.0
    %1437 = vmatpush1.msra.mxu0 %v1402
    %1438 = vmatprep.subr.mxu0 0.0
    %1439 = vmatpush1.msra.mxu0 %v1401
    %1440 = vmatprep.subr.mxu0 0.0
    %1441 = vmatpush1.msra.mxu0 %v1400
    %1442 = vmatprep.subr.mxu0 0.0
    %1443 = vmatpush1.msra.mxu0 %v1399
    %1444 = vmatprep.subr.mxu0 0.0
    %1445 = vmatpush1.msra.mxu0 %v1398
    %1446 = vmatprep.subr.mxu0 0.0
    %1447 = vmatpush2.msra.mxu0 0.0
    %1448 = vmatprep.subr.mxu0 0.0
    %1449 = vmatpush2.msra.mxu0 0.0
    %1450 = vmatprep.subr.mxu0 0.0
    %1451 = vmatpush2.msra.mxu0 0.0
    %1452 = vmatprep.subr.mxu0 0.0
    %1453 = vmatpush2.msra.mxu0 0.0
    %1454 = vmatprep.subr.mxu0 0.0
    %1455 = vmatpush2.msra.mxu0 0.0
    %1456 = vmatprep.subr.mxu0 0.0
    %1457 = vmatpush2.msra.mxu0 0.0
    %1458 = vmatprep.subr.mxu0 0.0
    %1459 = vmatpush2.msra.mxu0 0.0
    %1460 = vmatprep.subr.mxu0 0.0
    %1461 = vmatpush2.msra.mxu0 0.0
    %1462 = vmatprep.subr.mxu0 0.0
    %1463 = vmatpush2.msra.mxu0 0.0
    %1464 = vmatprep.subr.mxu0 0.0
    %1465 = vmatpush2.msra.mxu0 0.0
    %1466 = vmatprep.subr.mxu0 0.0
    %1467 = vmatpush2.msra.mxu0 0.0
    %1468 = vmatprep.subr.mxu0 0.0
    %1469 = vmatpush2.msra.mxu0 0.0
    %1470 = vmatprep.subr.mxu0 0.0
    %1471 = vmatpush2.msra.mxu0 0.0
    %1472 = vmatprep.subr.mxu0 0.0
    %1473 = vmatpush2.msra.mxu0 0.0
    %1474 = vmatprep.subr.mxu0 0.0
    %1475 = vmatpush2.msra.mxu0 0.0
    %1476 = vmatprep.subr.mxu0 0.0
    %1477 = vmatpush2.msra.mxu0 0.0
    %1478 = vmatprep.mubr.f32.mxu0 0.0
    %1479 = vmatmul.mubr.f32.gmra.mxu0 %v1081
    %v1480 = vpop.f32.mrf.mxu0
    %v1481 = vadd.f32 0.0, %v1480
    %v1482 = vpop.f32.mrf.mxu0
    %1483 = vdwg.mxu0
    %v1484 = vadd.f32 %v1381, %v1481
    %v1485 = vmax.f32 %v1484, 0.0
    %v1486 = vrot.slane %v1485, 4
    %v1487 = vadd.f32 %v1485, %v1486
    %v1488 = vrot.slane %v1487, 2
    %v1489 = vadd.f32 %v1487, %v1488
    %v1490 = vrot.slane %v1489, 1
    %v1491 = vadd.f32 %v1489, %v1490
    %v1492 = vmul.f32 %v1491, %v483
    %v1493 = vsub.f32 %v1485, %v1492
    %v1494 = vmul.f32 %v1493, %v1493
    %v1495 = vrot.slane %v1494, 4
    %v1496 = vadd.f32 %v1494, %v1495
    %v1497 = vrot.slane %v1496, 2
    %v1498 = vadd.f32 %v1496, %v1497
    %v1499 = vrot.slane %v1498, 1
    %v1500 = vadd.f32 %v1498, %v1499
    %v1501 = vmul.f32 %v1500, %v483
    %v1502 = vadd.f32 %v1501, 1e-05
    %v1503 = vrsqrt.pop %v1502
    %v1504 = vmul.f32 %v1493, %v1503
    %v1505 = vld [vmem:[%s55] sm:$0x1]
    %v1507 = vlaneseq
    %v1508 = vshrl.u32 %v1507, 7
    %v1509 = vsub.s32 0, %v1508
    %v1510 = vrot.slane %v1505, %v1509
    %v1512 = vmul.f32 %v1504, %v1510
    %v1513 = vld [vmem:[%s57] sm:$0x1]
    %v1515 = vlaneseq
    %v1516 = vshrl.u32 %v1515, 7
    %v1517 = vsub.s32 0, %v1516
    %v1518 = vrot.slane %v1513, %v1517
    %v1520 = vadd.f32 %v1512, %v1518
    %v1521 = vld [vmem:[%s69] sm:$0x1]
    %v1522 = vld [vmem:[%s59] sm:$0xf]
    %v1523 = vld [vmem:[%s59 + $0x4] sm:$0xf]
    %v1524 = vld [vmem:[%s59 + $0x8] sm:$0xf]
    %v1525 = vld [vmem:[%s59 + $0xc] sm:$0xf]
    %v1526 = vld [vmem:[%s59 + $0x10] sm:$0xf]
    %v1527 = vld [vmem:[%s59 + $0x14] sm:$0xf]
    %v1528 = vld [vmem:[%s59 + $0x18] sm:$0xf]
    %v1529 = vld [vmem:[%s59 + $0x1c] sm:$0xf]
    %v1530 = vunpack.c.l.bf16 %v1522
    %v1531 = vunpack.c.l.bf16 %v1523
    %v1532 = vunpack.c.l.bf16 %v1524
    %v1533 = vunpack.c.l.bf16 %v1525
    %v1534 = vunpack.c.l.bf16 %v1526
    %v1535 = vunpack.c.l.bf16 %v1527
    %v1536 = vunpack.c.l.bf16 %v1528
    %v1537 = vunpack.c.l.bf16 %v1529
    %1538 = vmatprep.subr.mxu0 0.0
    %1539 = vmatpush1.msra.mxu0 0.0
    %1540 = vmatprep.subr.mxu0 0.0
    %1541 = vmatpush1.msra.mxu0 0.0
    %1542 = vmatprep.subr.mxu0 0.0
    %1543 = vmatpush1.msra.mxu0 0.0
    %1544 = vmatprep.subr.mxu0 0.0
    %1545 = vmatpush1.msra.mxu0 0.0
    %1546 = vmatprep.subr.mxu0 0.0
    %1547 = vmatpush1.msra.mxu0 0.0
    %1548 = vmatprep.subr.mxu0 0.0
    %1549 = vmatpush1.msra.mxu0 0.0
    %1550 = vmatprep.subr.mxu0 0.0
    %1551 = vmatpush1.msra.mxu0 0.0
    %1552 = vmatprep.subr.mxu0 0.0
    %1553 = vmatpush1.msra.mxu0 0.0
    %1554 = vmatprep.subr.mxu0 0.0
    %1555 = vmatpush1.msra.mxu0 %v1537
    %1556 = vmatprep.subr.mxu0 0.0
    %1557 = vmatpush1.msra.mxu0 %v1536
    %1558 = vmatprep.subr.mxu0 0.0
    %1559 = vmatpush1.msra.mxu0 %v1535
    %1560 = vmatprep.subr.mxu0 0.0
    %1561 = vmatpush1.msra.mxu0 %v1534
    %1562 = vmatprep.subr.mxu0 0.0
    %1563 = vmatpush1.msra.mxu0 %v1533
    %1564 = vmatprep.subr.mxu0 0.0
    %1565 = vmatpush1.msra.mxu0 %v1532
    %1566 = vmatprep.subr.mxu0 0.0
    %1567 = vmatpush1.msra.mxu0 %v1531
    %1568 = vmatprep.subr.mxu0 0.0
    %1569 = vmatpush1.msra.mxu0 %v1530
    %1570 = vmatprep.subr.mxu0 0.0
    %1571 = vmatpush2.msra.mxu0 0.0
    %1572 = vmatprep.subr.mxu0 0.0
    %1573 = vmatpush2.msra.mxu0 0.0
    %1574 = vmatprep.subr.mxu0 0.0
    %1575 = vmatpush2.msra.mxu0 0.0
    %1576 = vmatprep.subr.mxu0 0.0
    %1577 = vmatpush2.msra.mxu0 0.0
    %1578 = vmatprep.subr.mxu0 0.0
    %1579 = vmatpush2.msra.mxu0 0.0
    %1580 = vmatprep.subr.mxu0 0.0
    %1581 = vmatpush2.msra.mxu0 0.0
    %1582 = vmatprep.subr.mxu0 0.0
    %1583 = vmatpush2.msra.mxu0 0.0
    %1584 = vmatprep.subr.mxu0 0.0
    %1585 = vmatpush2.msra.mxu0 0.0
    %1586 = vmatprep.subr.mxu0 0.0
    %1587 = vmatpush2.msra.mxu0 0.0
    %1588 = vmatprep.subr.mxu0 0.0
    %1589 = vmatpush2.msra.mxu0 0.0
    %1590 = vmatprep.subr.mxu0 0.0
    %1591 = vmatpush2.msra.mxu0 0.0
    %1592 = vmatprep.subr.mxu0 0.0
    %1593 = vmatpush2.msra.mxu0 0.0
    %1594 = vmatprep.subr.mxu0 0.0
    %1595 = vmatpush2.msra.mxu0 0.0
    %1596 = vmatprep.subr.mxu0 0.0
    %1597 = vmatpush2.msra.mxu0 0.0
    %1598 = vmatprep.subr.mxu0 0.0
    %1599 = vmatpush2.msra.mxu0 0.0
    %1600 = vmatprep.subr.mxu0 0.0
    %1601 = vmatpush2.msra.mxu0 0.0
    %1602 = vmatprep.mubr.f32.mxu0 0.0
    %1603 = vmatmul.mubr.f32.gmra.mxu0 %v397
    %v1604 = vpop.f32.mrf.mxu0
    %v1605 = vadd.f32 0.0, %v1604
    %v1606 = vpop.f32.mrf.mxu0
    %1607 = vdwg.mxu0
    %v1609 = vlaneseq
    %v1610 = vshrl.u32 %v1609, 7
    %v1611 = vsub.s32 0, %v1610
    %v1612 = vrot.slane %v1521, %v1611
    %v1614 = vadd.f32 %v1612, %v1605
    %v1615 = vld [vmem:[%s61] sm:$0xf]
    %v1616 = vld [vmem:[%s61 + $0x4] sm:$0xf]
    %v1617 = vld [vmem:[%s61 + $0x8] sm:$0xf]
    %v1618 = vld [vmem:[%s61 + $0xc] sm:$0xf]
    %v1619 = vld [vmem:[%s61 + $0x10] sm:$0xf]
    %v1620 = vld [vmem:[%s61 + $0x14] sm:$0xf]
    %v1621 = vld [vmem:[%s61 + $0x18] sm:$0xf]
    %v1622 = vld [vmem:[%s61 + $0x1c] sm:$0xf]
    %v1623 = vld [vmem:[%s61 + $0x20] sm:$0xf]
    %v1624 = vld [vmem:[%s61 + $0x24] sm:$0xf]
    %v1625 = vld [vmem:[%s61 + $0x28] sm:$0xf]
    %v1626 = vld [vmem:[%s61 + $0x2c] sm:$0xf]
    %v1627 = vld [vmem:[%s61 + $0x30] sm:$0xf]
    %v1628 = vld [vmem:[%s61 + $0x34] sm:$0xf]
    %v1629 = vld [vmem:[%s61 + $0x38] sm:$0xf]
    %v1630 = vld [vmem:[%s61 + $0x3c] sm:$0xf]
    %v1631 = vunpack.c.l.bf16 %v1615
    %v1632 = vunpack.c.l.bf16 %v1616
    %v1633 = vunpack.c.l.bf16 %v1617
    %v1634 = vunpack.c.l.bf16 %v1618
    %v1635 = vunpack.c.l.bf16 %v1619
    %v1636 = vunpack.c.l.bf16 %v1620
    %v1637 = vunpack.c.l.bf16 %v1621
    %v1638 = vunpack.c.l.bf16 %v1622
    %v1639 = vunpack.c.l.bf16 %v1623
    %v1640 = vunpack.c.l.bf16 %v1624
    %v1641 = vunpack.c.l.bf16 %v1625
    %v1642 = vunpack.c.l.bf16 %v1626
    %v1643 = vunpack.c.l.bf16 %v1627
    %v1644 = vunpack.c.l.bf16 %v1628
    %v1645 = vunpack.c.l.bf16 %v1629
    %v1646 = vunpack.c.l.bf16 %v1630
    %1647 = vmatprep.subr.mxu0 0.0
    %1648 = vmatpush1.msra.mxu0 %v1646
    %1649 = vmatprep.subr.mxu0 0.0
    %1650 = vmatpush1.msra.mxu0 %v1645
    %1651 = vmatprep.subr.mxu0 0.0
    %1652 = vmatpush1.msra.mxu0 %v1644
    %1653 = vmatprep.subr.mxu0 0.0
    %1654 = vmatpush1.msra.mxu0 %v1643
    %1655 = vmatprep.subr.mxu0 0.0
    %1656 = vmatpush1.msra.mxu0 %v1642
    %1657 = vmatprep.subr.mxu0 0.0
    %1658 = vmatpush1.msra.mxu0 %v1641
    %1659 = vmatprep.subr.mxu0 0.0
    %1660 = vmatpush1.msra.mxu0 %v1640
    %1661 = vmatprep.subr.mxu0 0.0
    %1662 = vmatpush1.msra.mxu0 %v1639
    %1663 = vmatprep.subr.mxu0 0.0
    %1664 = vmatpush1.msra.mxu0 %v1638
    %1665 = vmatprep.subr.mxu0 0.0
    %1666 = vmatpush1.msra.mxu0 %v1637
    %1667 = vmatprep.subr.mxu0 0.0
    %1668 = vmatpush1.msra.mxu0 %v1636
    %1669 = vmatprep.subr.mxu0 0.0
    %1670 = vmatpush1.msra.mxu0 %v1635
    %1671 = vmatprep.subr.mxu0 0.0
    %1672 = vmatpush1.msra.mxu0 %v1634
    %1673 = vmatprep.subr.mxu0 0.0
    %1674 = vmatpush1.msra.mxu0 %v1633
    %1675 = vmatprep.subr.mxu0 0.0
    %1676 = vmatpush1.msra.mxu0 %v1632
    %1677 = vmatprep.subr.mxu0 0.0
    %1678 = vmatpush1.msra.mxu0 %v1631
    %1679 = vmatprep.subr.mxu0 0.0
    %1680 = vmatpush2.msra.mxu0 0.0
    %1681 = vmatprep.subr.mxu0 0.0
    %1682 = vmatpush2.msra.mxu0 0.0
    %1683 = vmatprep.subr.mxu0 0.0
    %1684 = vmatpush2.msra.mxu0 0.0
    %1685 = vmatprep.subr.mxu0 0.0
    %1686 = vmatpush2.msra.mxu0 0.0
    %1687 = vmatprep.subr.mxu0 0.0
    %1688 = vmatpush2.msra.mxu0 0.0
    %1689 = vmatprep.subr.mxu0 0.0
    %1690 = vmatpush2.msra.mxu0 0.0
    %1691 = vmatprep.subr.mxu0 0.0
    %1692 = vmatpush2.msra.mxu0 0.0
    %1693 = vmatprep.subr.mxu0 0.0
    %1694 = vmatpush2.msra.mxu0 0.0
    %1695 = vmatprep.subr.mxu0 0.0
    %1696 = vmatpush2.msra.mxu0 0.0
    %1697 = vmatprep.subr.mxu0 0.0
    %1698 = vmatpush2.msra.mxu0 0.0
    %1699 = vmatprep.subr.mxu0 0.0
    %1700 = vmatpush2.msra.mxu0 0.0
    %1701 = vmatprep.subr.mxu0 0.0
    %1702 = vmatpush2.msra.mxu0 0.0
    %1703 = vmatprep.subr.mxu0 0.0
    %1704 = vmatpush2.msra.mxu0 0.0
    %1705 = vmatprep.subr.mxu0 0.0
    %1706 = vmatpush2.msra.mxu0 0.0
    %1707 = vmatprep.subr.mxu0 0.0
    %1708 = vmatpush2.msra.mxu0 0.0
    %1709 = vmatprep.subr.mxu0 0.0
    %1710 = vmatpush2.msra.mxu0 0.0
    %1711 = vmatprep.mubr.f32.mxu0 0.0
    %1712 = vmatmul.mubr.f32.gmra.mxu0 %v512
    %v1713 = vpop.f32.mrf.mxu0
    %v1714 = vadd.f32 0.0, %v1713
    %v1715 = vpop.f32.mrf.mxu0
    %1716 = vdwg.mxu0
    %v1717 = vadd.f32 %v1614, %v1714
    %v1718 = vld [vmem:[%s63] sm:$0xf]
    %v1719 = vld [vmem:[%s63 + $0x4] sm:$0xf]
    %v1720 = vld [vmem:[%s63 + $0x8] sm:$0xf]
    %v1721 = vld [vmem:[%s63 + $0xc] sm:$0xf]
    %v1722 = vld [vmem:[%s63 + $0x10] sm:$0xf]
    %v1723 = vld [vmem:[%s63 + $0x14] sm:$0xf]
    %v1724 = vld [vmem:[%s63 + $0x18] sm:$0xf]
    %v1725 = vld [vmem:[%s63 + $0x1c] sm:$0xf]
    %v1726 = vld [vmem:[%s63 + $0x20] sm:$0xf]
    %v1727 = vld [vmem:[%s63 + $0x24] sm:$0xf]
    %v1728 = vld [vmem:[%s63 + $0x28] sm:$0xf]
    %v1729 = vld [vmem:[%s63 + $0x2c] sm:$0xf]
    %v1730 = vld [vmem:[%s63 + $0x30] sm:$0xf]
    %v1731 = vld [vmem:[%s63 + $0x34] sm:$0xf]
    %v1732 = vld [vmem:[%s63 + $0x38] sm:$0xf]
    %v1733 = vld [vmem:[%s63 + $0x3c] sm:$0xf]
    %v1734 = vunpack.c.l.bf16 %v1718
    %v1735 = vunpack.c.l.bf16 %v1719
    %v1736 = vunpack.c.l.bf16 %v1720
    %v1737 = vunpack.c.l.bf16 %v1721
    %v1738 = vunpack.c.l.bf16 %v1722
    %v1739 = vunpack.c.l.bf16 %v1723
    %v1740 = vunpack.c.l.bf16 %v1724
    %v1741 = vunpack.c.l.bf16 %v1725
    %v1742 = vunpack.c.l.bf16 %v1726
    %v1743 = vunpack.c.l.bf16 %v1727
    %v1744 = vunpack.c.l.bf16 %v1728
    %v1745 = vunpack.c.l.bf16 %v1729
    %v1746 = vunpack.c.l.bf16 %v1730
    %v1747 = vunpack.c.l.bf16 %v1731
    %v1748 = vunpack.c.l.bf16 %v1732
    %v1749 = vunpack.c.l.bf16 %v1733
    %1750 = vmatprep.subr.mxu0 0.0
    %1751 = vmatpush1.msra.mxu0 %v1749
    %1752 = vmatprep.subr.mxu0 0.0
    %1753 = vmatpush1.msra.mxu0 %v1748
    %1754 = vmatprep.subr.mxu0 0.0
    %1755 = vmatpush1.msra.mxu0 %v1747
    %1756 = vmatprep.subr.mxu0 0.0
    %1757 = vmatpush1.msra.mxu0 %v1746
    %1758 = vmatprep.subr.mxu0 0.0
    %1759 = vmatpush1.msra.mxu0 %v1745
    %1760 = vmatprep.subr.mxu0 0.0
    %1761 = vmatpush1.msra.mxu0 %v1744
    %1762 = vmatprep.subr.mxu0 0.0
    %1763 = vmatpush1.msra.mxu0 %v1743
    %1764 = vmatprep.subr.mxu0 0.0
    %1765 = vmatpush1.msra.mxu0 %v1742
    %1766 = vmatprep.subr.mxu0 0.0
    %1767 = vmatpush1.msra.mxu0 %v1741
    %1768 = vmatprep.subr.mxu0 0.0
    %1769 = vmatpush1.msra.mxu0 %v1740
    %1770 = vmatprep.subr.mxu0 0.0
    %1771 = vmatpush1.msra.mxu0 %v1739
    %1772 = vmatprep.subr.mxu0 0.0
    %1773 = vmatpush1.msra.mxu0 %v1738
    %1774 = vmatprep.subr.mxu0 0.0
    %1775 = vmatpush1.msra.mxu0 %v1737
    %1776 = vmatprep.subr.mxu0 0.0
    %1777 = vmatpush1.msra.mxu0 %v1736
    %1778 = vmatprep.subr.mxu0 0.0
    %1779 = vmatpush1.msra.mxu0 %v1735
    %1780 = vmatprep.subr.mxu0 0.0
    %1781 = vmatpush1.msra.mxu0 %v1734
    %1782 = vmatprep.subr.mxu0 0.0
    %1783 = vmatpush2.msra.mxu0 0.0
    %1784 = vmatprep.subr.mxu0 0.0
    %1785 = vmatpush2.msra.mxu0 0.0
    %1786 = vmatprep.subr.mxu0 0.0
    %1787 = vmatpush2.msra.mxu0 0.0
    %1788 = vmatprep.subr.mxu0 0.0
    %1789 = vmatpush2.msra.mxu0 0.0
    %1790 = vmatprep.subr.mxu0 0.0
    %1791 = vmatpush2.msra.mxu0 0.0
    %1792 = vmatprep.subr.mxu0 0.0
    %1793 = vmatpush2.msra.mxu0 0.0
    %1794 = vmatprep.subr.mxu0 0.0
    %1795 = vmatpush2.msra.mxu0 0.0
    %1796 = vmatprep.subr.mxu0 0.0
    %1797 = vmatpush2.msra.mxu0 0.0
    %1798 = vmatprep.subr.mxu0 0.0
    %1799 = vmatpush2.msra.mxu0 0.0
    %1800 = vmatprep.subr.mxu0 0.0
    %1801 = vmatpush2.msra.mxu0 0.0
    %1802 = vmatprep.subr.mxu0 0.0
    %1803 = vmatpush2.msra.mxu0 0.0
    %1804 = vmatprep.subr.mxu0 0.0
    %1805 = vmatpush2.msra.mxu0 0.0
    %1806 = vmatprep.subr.mxu0 0.0
    %1807 = vmatpush2.msra.mxu0 0.0
    %1808 = vmatprep.subr.mxu0 0.0
    %1809 = vmatpush2.msra.mxu0 0.0
    %1810 = vmatprep.subr.mxu0 0.0
    %1811 = vmatpush2.msra.mxu0 0.0
    %1812 = vmatprep.subr.mxu0 0.0
    %1813 = vmatpush2.msra.mxu0 0.0
    %1814 = vmatprep.mubr.f32.mxu0 0.0
    %1815 = vmatmul.mubr.f32.gmra.mxu0 %v745
    %v1816 = vpop.f32.mrf.mxu0
    %v1817 = vadd.f32 0.0, %v1816
    %v1818 = vpop.f32.mrf.mxu0
    %1819 = vdwg.mxu0
    %v1820 = vadd.f32 %v1717, %v1817
    %v1821 = vld [vmem:[%s65] sm:$0xf]
    %v1822 = vld [vmem:[%s65 + $0x4] sm:$0xf]
    %v1823 = vld [vmem:[%s65 + $0x8] sm:$0xf]
    %v1824 = vld [vmem:[%s65 + $0xc] sm:$0xf]
    %v1825 = vld [vmem:[%s65 + $0x10] sm:$0xf]
    %v1826 = vld [vmem:[%s65 + $0x14] sm:$0xf]
    %v1827 = vld [vmem:[%s65 + $0x18] sm:$0xf]
    %v1828 = vld [vmem:[%s65 + $0x1c] sm:$0xf]
    %v1829 = vld [vmem:[%s65 + $0x20] sm:$0xf]
    %v1830 = vld [vmem:[%s65 + $0x24] sm:$0xf]
    %v1831 = vld [vmem:[%s65 + $0x28] sm:$0xf]
    %v1832 = vld [vmem:[%s65 + $0x2c] sm:$0xf]
    %v1833 = vld [vmem:[%s65 + $0x30] sm:$0xf]
    %v1834 = vld [vmem:[%s65 + $0x34] sm:$0xf]
    %v1835 = vld [vmem:[%s65 + $0x38] sm:$0xf]
    %v1836 = vld [vmem:[%s65 + $0x3c] sm:$0xf]
    %v1837 = vunpack.c.l.bf16 %v1821
    %v1838 = vunpack.c.l.bf16 %v1822
    %v1839 = vunpack.c.l.bf16 %v1823
    %v1840 = vunpack.c.l.bf16 %v1824
    %v1841 = vunpack.c.l.bf16 %v1825
    %v1842 = vunpack.c.l.bf16 %v1826
    %v1843 = vunpack.c.l.bf16 %v1827
    %v1844 = vunpack.c.l.bf16 %v1828
    %v1845 = vunpack.c.l.bf16 %v1829
    %v1846 = vunpack.c.l.bf16 %v1830
    %v1847 = vunpack.c.l.bf16 %v1831
    %v1848 = vunpack.c.l.bf16 %v1832
    %v1849 = vunpack.c.l.bf16 %v1833
    %v1850 = vunpack.c.l.bf16 %v1834
    %v1851 = vunpack.c.l.bf16 %v1835
    %v1852 = vunpack.c.l.bf16 %v1836
    %1853 = vmatprep.subr.mxu0 0.0
    %1854 = vmatpush1.msra.mxu0 %v1852
    %1855 = vmatprep.subr.mxu0 0.0
    %1856 = vmatpush1.msra.mxu0 %v1851
    %1857 = vmatprep.subr.mxu0 0.0
    %1858 = vmatpush1.msra.mxu0 %v1850
    %1859 = vmatprep.subr.mxu0 0.0
    %1860 = vmatpush1.msra.mxu0 %v1849
    %1861 = vmatprep.subr.mxu0 0.0
    %1862 = vmatpush1.msra.mxu0 %v1848
    %1863 = vmatprep.subr.mxu0 0.0
    %1864 = vmatpush1.msra.mxu0 %v1847
    %1865 = vmatprep.subr.mxu0 0.0
    %1866 = vmatpush1.msra.mxu0 %v1846
    %1867 = vmatprep.subr.mxu0 0.0
    %1868 = vmatpush1.msra.mxu0 %v1845
    %1869 = vmatprep.subr.mxu0 0.0
    %1870 = vmatpush1.msra.mxu0 %v1844
    %1871 = vmatprep.subr.mxu0 0.0
    %1872 = vmatpush1.msra.mxu0 %v1843
    %1873 = vmatprep.subr.mxu0 0.0
    %1874 = vmatpush1.msra.mxu0 %v1842
    %1875 = vmatprep.subr.mxu0 0.0
    %1876 = vmatpush1.msra.mxu0 %v1841
    %1877 = vmatprep.subr.mxu0 0.0
    %1878 = vmatpush1.msra.mxu0 %v1840
    %1879 = vmatprep.subr.mxu0 0.0
    %1880 = vmatpush1.msra.mxu0 %v1839
    %1881 = vmatprep.subr.mxu0 0.0
    %1882 = vmatpush1.msra.mxu0 %v1838
    %1883 = vmatprep.subr.mxu0 0.0
    %1884 = vmatpush1.msra.mxu0 %v1837
    %1885 = vmatprep.subr.mxu0 0.0
    %1886 = vmatpush2.msra.mxu0 0.0
    %1887 = vmatprep.subr.mxu0 0.0
    %1888 = vmatpush2.msra.mxu0 0.0
    %1889 = vmatprep.subr.mxu0 0.0
    %1890 = vmatpush2.msra.mxu0 0.0
    %1891 = vmatprep.subr.mxu0 0.0
    %1892 = vmatpush2.msra.mxu0 0.0
    %1893 = vmatprep.subr.mxu0 0.0
    %1894 = vmatpush2.msra.mxu0 0.0
    %1895 = vmatprep.subr.mxu0 0.0
    %1896 = vmatpush2.msra.mxu0 0.0
    %1897 = vmatprep.subr.mxu0 0.0
    %1898 = vmatpush2.msra.mxu0 0.0
    %1899 = vmatprep.subr.mxu0 0.0
    %1900 = vmatpush2.msra.mxu0 0.0
    %1901 = vmatprep.subr.mxu0 0.0
    %1902 = vmatpush2.msra.mxu0 0.0
    %1903 = vmatprep.subr.mxu0 0.0
    %1904 = vmatpush2.msra.mxu0 0.0
    %1905 = vmatprep.subr.mxu0 0.0
    %1906 = vmatpush2.msra.mxu0 0.0
    %1907 = vmatprep.subr.mxu0 0.0
    %1908 = vmatpush2.msra.mxu0 0.0
    %1909 = vmatprep.subr.mxu0 0.0
    %1910 = vmatpush2.msra.mxu0 0.0
    %1911 = vmatprep.subr.mxu0 0.0
    %1912 = vmatpush2.msra.mxu0 0.0
    %1913 = vmatprep.subr.mxu0 0.0
    %1914 = vmatpush2.msra.mxu0 0.0
    %1915 = vmatprep.subr.mxu0 0.0
    %1916 = vmatpush2.msra.mxu0 0.0
    %1917 = vmatprep.mubr.f32.mxu0 0.0
    %1918 = vmatmul.mubr.f32.gmra.mxu0 %v1081
    %v1919 = vpop.f32.mrf.mxu0
    %v1920 = vadd.f32 0.0, %v1919
    %v1921 = vpop.f32.mrf.mxu0
    %1922 = vdwg.mxu0
    %v1923 = vadd.f32 %v1820, %v1920
    %v1924 = vld [vmem:[%s67] sm:$0xf]
    %v1925 = vld [vmem:[%s67 + $0x4] sm:$0xf]
    %v1926 = vld [vmem:[%s67 + $0x8] sm:$0xf]
    %v1927 = vld [vmem:[%s67 + $0xc] sm:$0xf]
    %v1928 = vld [vmem:[%s67 + $0x10] sm:$0xf]
    %v1929 = vld [vmem:[%s67 + $0x14] sm:$0xf]
    %v1930 = vld [vmem:[%s67 + $0x18] sm:$0xf]
    %v1931 = vld [vmem:[%s67 + $0x1c] sm:$0xf]
    %v1932 = vld [vmem:[%s67 + $0x20] sm:$0xf]
    %v1933 = vld [vmem:[%s67 + $0x24] sm:$0xf]
    %v1934 = vld [vmem:[%s67 + $0x28] sm:$0xf]
    %v1935 = vld [vmem:[%s67 + $0x2c] sm:$0xf]
    %v1936 = vld [vmem:[%s67 + $0x30] sm:$0xf]
    %v1937 = vld [vmem:[%s67 + $0x34] sm:$0xf]
    %v1938 = vld [vmem:[%s67 + $0x38] sm:$0xf]
    %v1939 = vld [vmem:[%s67 + $0x3c] sm:$0xf]
    %v1940 = vunpack.c.l.bf16 %v1924
    %v1941 = vunpack.c.l.bf16 %v1925
    %v1942 = vunpack.c.l.bf16 %v1926
    %v1943 = vunpack.c.l.bf16 %v1927
    %v1944 = vunpack.c.l.bf16 %v1928
    %v1945 = vunpack.c.l.bf16 %v1929
    %v1946 = vunpack.c.l.bf16 %v1930
    %v1947 = vunpack.c.l.bf16 %v1931
    %v1948 = vunpack.c.l.bf16 %v1932
    %v1949 = vunpack.c.l.bf16 %v1933
    %v1950 = vunpack.c.l.bf16 %v1934
    %v1951 = vunpack.c.l.bf16 %v1935
    %v1952 = vunpack.c.l.bf16 %v1936
    %v1953 = vunpack.c.l.bf16 %v1937
    %v1954 = vunpack.c.l.bf16 %v1938
    %v1955 = vunpack.c.l.bf16 %v1939
    %1956 = vmatprep.subr.mxu0 0.0
    %1957 = vmatpush1.msra.mxu0 %v1955
    %1958 = vmatprep.subr.mxu0 0.0
    %1959 = vmatpush1.msra.mxu0 %v1954
    %1960 = vmatprep.subr.mxu0 0.0
    %1961 = vmatpush1.msra.mxu0 %v1953
    %1962 = vmatprep.subr.mxu0 0.0
    %1963 = vmatpush1.msra.mxu0 %v1952
    %1964 = vmatprep.subr.mxu0 0.0
    %1965 = vmatpush1.msra.mxu0 %v1951
    %1966 = vmatprep.subr.mxu0 0.0
    %1967 = vmatpush1.msra.mxu0 %v1950
    %1968 = vmatprep.subr.mxu0 0.0
    %1969 = vmatpush1.msra.mxu0 %v1949
    %1970 = vmatprep.subr.mxu0 0.0
    %1971 = vmatpush1.msra.mxu0 %v1948
    %1972 = vmatprep.subr.mxu0 0.0
    %1973 = vmatpush1.msra.mxu0 %v1947
    %1974 = vmatprep.subr.mxu0 0.0
    %1975 = vmatpush1.msra.mxu0 %v1946
    %1976 = vmatprep.subr.mxu0 0.0
    %1977 = vmatpush1.msra.mxu0 %v1945
    %1978 = vmatprep.subr.mxu0 0.0
    %1979 = vmatpush1.msra.mxu0 %v1944
    %1980 = vmatprep.subr.mxu0 0.0
    %1981 = vmatpush1.msra.mxu0 %v1943
    %1982 = vmatprep.subr.mxu0 0.0
    %1983 = vmatpush1.msra.mxu0 %v1942
    %1984 = vmatprep.subr.mxu0 0.0
    %1985 = vmatpush1.msra.mxu0 %v1941
    %1986 = vmatprep.subr.mxu0 0.0
    %1987 = vmatpush1.msra.mxu0 %v1940
    %1988 = vmatprep.subr.mxu0 0.0
    %1989 = vmatpush2.msra.mxu0 0.0
    %1990 = vmatprep.subr.mxu0 0.0
    %1991 = vmatpush2.msra.mxu0 0.0
    %1992 = vmatprep.subr.mxu0 0.0
    %1993 = vmatpush2.msra.mxu0 0.0
    %1994 = vmatprep.subr.mxu0 0.0
    %1995 = vmatpush2.msra.mxu0 0.0
    %1996 = vmatprep.subr.mxu0 0.0
    %1997 = vmatpush2.msra.mxu0 0.0
    %1998 = vmatprep.subr.mxu0 0.0
    %1999 = vmatpush2.msra.mxu0 0.0
    %2000 = vmatprep.subr.mxu0 0.0
    %2001 = vmatpush2.msra.mxu0 0.0
    %2002 = vmatprep.subr.mxu0 0.0
    %2003 = vmatpush2.msra.mxu0 0.0
    %2004 = vmatprep.subr.mxu0 0.0
    %2005 = vmatpush2.msra.mxu0 0.0
    %2006 = vmatprep.subr.mxu0 0.0
    %2007 = vmatpush2.msra.mxu0 0.0
    %2008 = vmatprep.subr.mxu0 0.0
    %2009 = vmatpush2.msra.mxu0 0.0
    %2010 = vmatprep.subr.mxu0 0.0
    %2011 = vmatpush2.msra.mxu0 0.0
    %2012 = vmatprep.subr.mxu0 0.0
    %2013 = vmatpush2.msra.mxu0 0.0
    %2014 = vmatprep.subr.mxu0 0.0
    %2015 = vmatpush2.msra.mxu0 0.0
    %2016 = vmatprep.subr.mxu0 0.0
    %2017 = vmatpush2.msra.mxu0 0.0
    %2018 = vmatprep.subr.mxu0 0.0
    %2019 = vmatpush2.msra.mxu0 0.0
    %2020 = vmatprep.mubr.f32.mxu0 0.0
    %2021 = vmatmul.mubr.f32.gmra.mxu0 %v1520
    %v2022 = vpop.f32.mrf.mxu0
    %v2023 = vadd.f32 0.0, %v2022
    %v2024 = vpop.f32.mrf.mxu0
    %2025 = vdwg.mxu0
    %v2026 = vadd.f32 %v1923, %v2023
    %v2027 = vmax.f32 %v2026, 0.0
    %v2028 = vld [vmem:[%s71] sm:$0xf]
    %v2029 = vld [vmem:[%s71 + $0x4] sm:$0xf]
    %v2030 = vld [vmem:[%s71 + $0x8] sm:$0xf]
    %v2031 = vld [vmem:[%s71 + $0xc] sm:$0xf]
    %v2032 = vld [vmem:[%s71 + $0x10] sm:$0xf]
    %v2033 = vld [vmem:[%s71 + $0x14] sm:$0xf]
    %v2034 = vld [vmem:[%s71 + $0x18] sm:$0xf]
    %v2035 = vld [vmem:[%s71 + $0x1c] sm:$0xf]
    %v2036 = vld [vmem:[%s71 + $0x20] sm:$0xf]
    %v2037 = vld [vmem:[%s71 + $0x24] sm:$0xf]
    %v2038 = vld [vmem:[%s71 + $0x28] sm:$0xf]
    %v2039 = vld [vmem:[%s71 + $0x2c] sm:$0xf]
    %v2040 = vld [vmem:[%s71 + $0x30] sm:$0xf]
    %v2041 = vld [vmem:[%s71 + $0x34] sm:$0xf]
    %v2042 = vld [vmem:[%s71 + $0x38] sm:$0xf]
    %v2043 = vld [vmem:[%s71 + $0x3c] sm:$0xf]
    %v2044 = vunpack.c.l.bf16 %v2028
    %v2045 = vunpack.c.l.bf16 %v2029
    %v2046 = vunpack.c.l.bf16 %v2030
    %v2047 = vunpack.c.l.bf16 %v2031
    %v2048 = vunpack.c.l.bf16 %v2032
    %v2049 = vunpack.c.l.bf16 %v2033
    %v2050 = vunpack.c.l.bf16 %v2034
    %v2051 = vunpack.c.l.bf16 %v2035
    %v2052 = vunpack.c.l.bf16 %v2036
    %v2053 = vunpack.c.l.bf16 %v2037
    %v2054 = vunpack.c.l.bf16 %v2038
    %v2055 = vunpack.c.l.bf16 %v2039
    %v2056 = vunpack.c.l.bf16 %v2040
    %v2057 = vunpack.c.l.bf16 %v2041
    %v2058 = vunpack.c.l.bf16 %v2042
    %v2059 = vunpack.c.l.bf16 %v2043
    %v2060 = vld [vmem:[%s73] sm:$0x1]
    %v2062 = vlaneseq
    %v2063 = vshrl.u32 %v2062, 7
    %v2064 = vsub.s32 0, %v2063
    %v2065 = vrot.slane %v2060, %v2064
    %2067 = vmatprep.subr.mxu0 0.0
    %2068 = vmatpush1.msra.mxu0 %v2059
    %2069 = vmatprep.subr.mxu0 0.0
    %2070 = vmatpush1.msra.mxu0 %v2058
    %2071 = vmatprep.subr.mxu0 0.0
    %2072 = vmatpush1.msra.mxu0 %v2057
    %2073 = vmatprep.subr.mxu0 0.0
    %2074 = vmatpush1.msra.mxu0 %v2056
    %2075 = vmatprep.subr.mxu0 0.0
    %2076 = vmatpush1.msra.mxu0 %v2055
    %2077 = vmatprep.subr.mxu0 0.0
    %2078 = vmatpush1.msra.mxu0 %v2054
    %2079 = vmatprep.subr.mxu0 0.0
    %2080 = vmatpush1.msra.mxu0 %v2053
    %2081 = vmatprep.subr.mxu0 0.0
    %2082 = vmatpush1.msra.mxu0 %v2052
    %2083 = vmatprep.subr.mxu0 0.0
    %2084 = vmatpush1.msra.mxu0 %v2051
    %2085 = vmatprep.subr.mxu0 0.0
    %2086 = vmatpush1.msra.mxu0 %v2050
    %2087 = vmatprep.subr.mxu0 0.0
    %2088 = vmatpush1.msra.mxu0 %v2049
    %2089 = vmatprep.subr.mxu0 0.0
    %2090 = vmatpush1.msra.mxu0 %v2048
    %2091 = vmatprep.subr.mxu0 0.0
    %2092 = vmatpush1.msra.mxu0 %v2047
    %2093 = vmatprep.subr.mxu0 0.0
    %2094 = vmatpush1.msra.mxu0 %v2046
    %2095 = vmatprep.subr.mxu0 0.0
    %2096 = vmatpush1.msra.mxu0 %v2045
    %2097 = vmatprep.subr.mxu0 0.0
    %2098 = vmatpush1.msra.mxu0 %v2044
    %2099 = vmatprep.subr.mxu0 0.0
    %2100 = vmatpush2.msra.mxu0 0.0
    %2101 = vmatprep.subr.mxu0 0.0
    %2102 = vmatpush2.msra.mxu0 0.0
    %2103 = vmatprep.subr.mxu0 0.0
    %2104 = vmatpush2.msra.mxu0 0.0
    %2105 = vmatprep.subr.mxu0 0.0
    %2106 = vmatpush2.msra.mxu0 0.0
    %2107 = vmatprep.subr.mxu0 0.0
    %2108 = vmatpush2.msra.mxu0 0.0
    %2109 = vmatprep.subr.mxu0 0.0
    %2110 = vmatpush2.msra.mxu0 0.0
    %2111 = vmatprep.subr.mxu0 0.0
    %2112 = vmatpush2.msra.mxu0 0.0
    %2113 = vmatprep.subr.mxu0 0.0
    %2114 = vmatpush2.msra.mxu0 0.0
    %2115 = vmatprep.subr.mxu0 0.0
    %2116 = vmatpush2.msra.mxu0 0.0
    %2117 = vmatprep.subr.mxu0 0.0
    %2118 = vmatpush2.msra.mxu0 0.0
    %2119 = vmatprep.subr.mxu0 0.0
    %2120 = vmatpush2.msra.mxu0 0.0
    %2121 = vmatprep.subr.mxu0 0.0
    %2122 = vmatpush2.msra.mxu0 0.0
    %2123 = vmatprep.subr.mxu0 0.0
    %2124 = vmatpush2.msra.mxu0 0.0
    %2125 = vmatprep.subr.mxu0 0.0
    %2126 = vmatpush2.msra.mxu0 0.0
    %2127 = vmatprep.subr.mxu0 0.0
    %2128 = vmatpush2.msra.mxu0 0.0
    %2129 = vmatprep.subr.mxu0 0.0
    %2130 = vmatpush2.msra.mxu0 0.0
    %2131 = vmatprep.mubr.f32.mxu0 0.0
    %2132 = vmatmul.mubr.f32.gmra.mxu0 %v2027
    %v2133 = vpop.f32.mrf.mxu0
    %v2134 = vadd.f32 %v2065, %v2133
    %v2135 = vpop.f32.mrf.mxu0
    %2136 = vdwg.mxu0
    %2137 = vst [vmem:[#allocation2] sm:$0xff] %v2134
    // Predicated region
    $region150: #{minn_forward.1} parent=1 // pred_check
      _
    $region151: #{minn_forward.1} parent=1 // pred_check_branch
      %2139 = sbr.rel (0) target = $region153
    $region152: #{minn_forward.1} parent=1 // pred_region
      %s2141 = ssub.s32 128, 128
      %2142 = vsyncadd [#allocation3], %s2141
      %s2144 = sshll.u32 [#allocation2], 4
      %s2145 = int_to_ptr.vmem [resolvable:$true] %s2144
      %2147 = dma.vmem_to_hbm [thread:$0]  %s2145, 128, %s75, [#allocation3]
    $region153: #{minn_forward.1} parent=1 // pred_fallthru
      _
    // Predicated region
    $region154: #{minn_forward.1} parent=1 // pred_check
      _
    $region155: #{minn_forward.1} parent=1 // pred_check_branch
      %2149 = sbr.rel (0) target = $region157
    $region156: #{minn_forward.1} parent=1 // pred_region
      %2150 = dma.done [#allocation3], 128
    $region157: #{minn_forward.1} parent=1 // pred_fallthru
      _
    %2151 = vsyncpa [#allocation3], 1

</llo_original>
